<compile_context>
chip_gen: v5e
topology: v5e:2x2
jax: 0.10.0
libtpu: 0.0.40
codegen_flags: <defaults>
</compile_context>

<pallas_src>
import functools

import jax
import jax.numpy as jnp
from jax import lax
from jax.experimental import pallas as pl
from jax.experimental.pallas import tpu as pltpu

BN_EPS = 1e-5
_INV_SQRT2 = 0.7071067811865476
_SQRT_2_OVER_PI = 0.7978845608028654


def _stats_kernel(x_ref, w1_ref, b1_ref, sum_ref, ssq_ref):
    """Pass 1: per-slice partial sum / sum-of-squares of h = x @ W1 + b1."""
    @pl.when(pl.program_id(1) == 0)
    def _init():
        sum_ref[...] = jnp.zeros_like(sum_ref)
        ssq_ref[...] = jnp.zeros_like(ssq_ref)

    x = x_ref[...].astype(w1_ref.dtype)
    h = jnp.dot(x, w1_ref[...], preferred_element_type=jnp.float32) + b1_ref[...]
    # f32 running sums (partial per parallel slice; combined in pass 2).
    sum_ref[...] += jnp.sum(h, axis=0, keepdims=True)[None]      # (1, 1, H)
    ssq_ref[...] += jnp.sum(h * h, axis=0, keepdims=True)[None]  # (1, 1, H)


def _apply_kernel(x_ref, w1_ref, b1_ref, sum_ref, ssq_ref, gamma_ref, beta_ref,
                  w2_ref, b2_ref, o_ref, *, inv_n, approximate_gelu):
    """Pass 2: Linear1 -> BN(affine) -> GELU -> Linear2 -> + residual for one row tile."""
    # Combine the per-slice partials and fold BN into (scale, shift).  This is a handful
    # of H-wide VPU ops per tile -- cheap, and it keeps this whole pass 'parallel'.
    total = jnp.sum(sum_ref[...], axis=0)       # (1, H)
    total_sq = jnp.sum(ssq_ref[...], axis=0)    # (1, H)
    mean = total * inv_n
    # Biased (training-mode) variance; clamp guards E[h^2]-E[h]^2 cancellation.
    var = jnp.maximum(total_sq * inv_n - mean * mean, 0.0)
    scale = gamma_ref[...] * lax.rsqrt(var + BN_EPS)
    shift = beta_ref[...] - mean * scale

    x = x_ref[...]
    h = jnp.dot(x.astype(w1_ref.dtype), w1_ref[...],
                preferred_element_type=jnp.float32) + b1_ref[...]
    h = h * scale + shift
    if approximate_gelu:
        # tanh GELU: transcendental goes to the otherwise-idle EUP slot instead of a
        # long erf polynomial on the VALU slot.
        g = 0.5 * h * (1.0 + jnp.tanh(_SQRT_2_OVER_PI * (h + 0.044715 * h * h * h)))
    else:
        # Exact-erf GELU == torch.nn.GELU() default (bitwise-faithful semantics).
        g = 0.5 * h * (1.0 + lax.erf(h * _INV_SQRT2))
    y = jnp.dot(g.astype(w2_ref.dtype), w2_ref[...],
                preferred_element_type=jnp.float32) + b2_ref[...]
    o_ref[...] = (y + x.astype(jnp.float32)).astype(o_ref.dtype)


def two_layer_nn(x, w1, b1, gamma, beta, w2, b2, *, tile_n=256,
                 matmul_dtype=jnp.bfloat16, approximate_gelu=True):
    """TwoLayerNN forward.

    Shapes: x:(N,Din)  w1:(Din,H)  b1/gamma/beta:(1,H)  w2:(H,Din)  b2:(1,Din).
    tile_n:          rows per grid step.  Prefer multiples of 256 on v6e/v7x (full MXU
                     M-dim), multiples of 128 on v5e; bigger is better until VMEM binds.
    matmul_dtype:    MXU input dtype for x/W1/W2 (default bf16: 2x MXU rate, half the
                     streamed-x DMA + resident-weight VMEM).  BN stats, GELU and the
                     residual stay float32.  Pass None for pure-f32 matmuls.
    approximate_gelu tanh GELU (EUP) vs exact erf (VALU / torch default).
    """
    N, Din = x.shape
    H = w1.shape[1]
    out_dtype = x.dtype

    tile_n = min(tile_n, N)
    assert N % tile_n == 0, "batch size must be divisible by tile_n"
    assert tile_n == N or tile_n % 8 == 0, "tile_n must be a multiple of 8"
    n_tiles = N // tile_n

    # Split the stats reduction 2-way so the outer grid axis can be 'parallel'
    # (one slice per TensorCore on v7x); single-TC chips just run slices back to back.
    n_par = 2 if (n_tiles >= 2 and n_tiles % 2 == 0) else 1
    n_inner = n_tiles // n_par

    if matmul_dtype is not None:
        w1 = w1.astype(matmul_dtype)
        w2 = w2.astype(matmul_dtype)
        x = x.astype(matmul_dtype)   # streamed tiles are bf16; residual added in f32 below

    # Explicit VMEM budget: double-buffered x/out tiles + resident weights + f32
    # intermediates, with 2x headroom.  Floor of 16 MiB (== v5e scoped default) is safe
    # on every generation; cap at 64 MiB (v7x physical per-TC VMEM).
    x_bytes = jnp.dtype(x.dtype).itemsize
    w_bytes = jnp.dtype(w1.dtype).itemsize
    out_bytes = jnp.dtype(out_dtype).itemsize
    est = (2 * tile_n * Din * (x_bytes + out_bytes)
           + 2 * (Din * H + H * Din) * w_bytes
           + 2 * (4 * H + Din) * 4
           + 2 * 2 * n_par * H * 4
           + 4 * tile_n * H * 4)
    vmem_limit = int(min(max(2 * est, 16 * 2 ** 20), 64 * 2 ** 20))

    # ---- pass 1: per-slice partial (sum, sum-of-squares), shape (n_par, 1, H) ----
    sums, ssqs = pl.pallas_call(
        _stats_kernel,
        grid=(n_par, n_inner),
        in_specs=[
            pl.BlockSpec((tile_n, Din), lambda p, i: (p * n_inner + i, 0)),
            pl.BlockSpec((Din, H), lambda p, i: (0, 0)),   # resident in VMEM
            pl.BlockSpec((1, H), lambda p, i: (0, 0)),
        ],
        out_specs=(pl.BlockSpec((1, 1, H), lambda p, i: (p, 0, 0)),
                   pl.BlockSpec((1, 1, H), lambda p, i: (p, 0, 0))),
        out_shape=(jax.ShapeDtypeStruct((n_par, 1, H), jnp.float32),
                   jax.ShapeDtypeStruct((n_par, 1, H), jnp.float32)),
        compiler_params=pltpu.CompilerParams(
            dimension_semantics=("parallel", "arbitrary"),
            vmem_limit_bytes=vmem_limit),
    )(x, w1, b1)

    # ---- pass 2: Linear1 -> BN -> GELU -> Linear2 -> residual; row tiles independent ----
    out = pl.pallas_call(
        functools.partial(_apply_kernel, inv_n=1.0 / N,
                          approximate_gelu=approximate_gelu),
        grid=(n_tiles,),
        in_specs=[
            pl.BlockSpec((tile_n, Din), lambda i: (i, 0)),     # streamed x tiles
            pl.BlockSpec((Din, H), lambda i: (0, 0)),          # resident weights / vectors
            pl.BlockSpec((1, H), lambda i: (0, 0)),
            pl.BlockSpec((n_par, 1, H), lambda i: (0, 0, 0)),
            pl.BlockSpec((n_par, 1, H), lambda i: (0, 0, 0)),
            pl.BlockSpec((1, H), lambda i: (0, 0)),
            pl.BlockSpec((1, H), lambda i: (0, 0)),
            pl.BlockSpec((H, Din), lambda i: (0, 0)),
            pl.BlockSpec((1, Din), lambda i: (0, 0)),
        ],
        out_specs=pl.BlockSpec((tile_n, Din), lambda i: (i, 0)),
        out_shape=jax.ShapeDtypeStruct((N, Din), out_dtype),
        compiler_params=pltpu.CompilerParams(
            dimension_semantics=("parallel",),                 # megacore on v7x
            vmem_limit_bytes=vmem_limit),
    )(x, w1, b1, sums, ssqs, gamma, beta, w2, b2)
    return out


def reference(x, w1, b1, gamma, beta, w2, b2):
    """Pure-JAX f32 reference: PyTorch training-mode BatchNorm1d + exact-erf GELU."""
    h = x @ w1 + b1
    mean = h.mean(axis=0, keepdims=True)
    var = ((h - mean) ** 2).mean(axis=0, keepdims=True)
    h = (h - mean) / jnp.sqrt(var + BN_EPS) * gamma + beta
    g = 0.5 * h * (1.0 + lax.erf(h * _INV_SQRT2))
    return g @ w2 + b2 + x


if __name__ == "__main__":
    # in_features == out_features (the residual requires it).  Feature dims are multiples
    # of 128 (lane-dense vregs / stores); batch 512 split into two 256-row tiles keeps the
    # MXU M-dim full on v6e/v7x and gives the stats pass two parallel slices (one per TC
    # on v7x) while still exercising the multi-tile accumulation path.
    N, Din, H = 512, 128, 256
    key = jax.random.PRNGKey(0)
    k0, k1, k2, k3, k4, k5, k6 = jax.random.split(key, 7)

    x = jax.random.normal(k0, (N, Din), dtype=jnp.float32)
    w1 = jax.random.normal(k1, (Din, H), dtype=jnp.float32) * (1.0 / jnp.sqrt(Din))
    b1 = jax.random.normal(k2, (1, H), dtype=jnp.float32) * 0.1
    gamma = 1.0 + 0.1 * jax.random.normal(k3, (1, H), dtype=jnp.float32)
    beta = 0.1 * jax.random.normal(k4, (1, H), dtype=jnp.float32)
    w2 = jax.random.normal(k5, (H, Din), dtype=jnp.float32) * (1.0 / jnp.sqrt(H))
    b2 = jax.random.normal(k6, (1, Din), dtype=jnp.float32) * 0.1

    fwd = jax.jit(functools.partial(two_layer_nn, tile_n=256,
                                    matmul_dtype=jnp.bfloat16, approximate_gelu=True))
    out = jax.block_until_ready(fwd(x, w1, b1, gamma, beta, w2, b2))

    ref = reference(x, w1, b1, gamma, beta, w2, b2)
    assert out.shape == (N, Din)
    # bf16 MXU inputs + tanh GELU vs the exact-erf f32 reference => loosened tolerance.
    max_err = float(jnp.max(jnp.abs(out - ref)))
    assert jnp.allclose(out, ref, atol=5e-2, rtol=5e-2), \
        f"mismatch vs pure-JAX reference (max abs err {max_err})"

    print("KERNEL_OK")
</pallas_src>

<mosaic_0001>
module attributes {stable_mosaic.version = 11 : i64} {
  func.func @_stats_kernel(%arg0: i32, %arg1: i32, %arg2: memref<256x128xbf16, #tpu.memory_space<vmem>>, %arg3: memref<128x256xbf16, #tpu.memory_space<vmem>>, %arg4: memref<1x256xf32, #tpu.memory_space<vmem>>, %arg5: memref<1x1x256xf32, #tpu.memory_space<vmem>>, %arg6: memref<1x1x256xf32, #tpu.memory_space<vmem>>) attributes {dimension_semantics = [#tpu.dimension_semantics<parallel>, #tpu.dimension_semantics<arbitrary>], iteration_bounds = array<i64: 2, 1>, scalar_prefetch = 0 : i64, scratch_operands = 0 : i64, tpu.core_type = #tpu.core_type<tc>, window_params = [{transform_indices = @transform_0, window_bounds = array<i64: 256, 128>}, {pipeline_mode = #tpu.pipeline_mode<synchronous>, transform_indices = @transform_1, window_bounds = array<i64: 128, 256>}, {pipeline_mode = #tpu.pipeline_mode<synchronous>, transform_indices = @transform_2, window_bounds = array<i64: 1, 256>}, {transform_indices = @transform_3, window_bounds = array<i64: 1, 1, 256>}, {transform_indices = @transform_4, window_bounds = array<i64: 1, 1, 256>}]} {
    %c0_i32 = arith.constant 0 : i32
    %0 = arith.cmpi eq, %arg1, %c0_i32 : i32
    %1 = arith.extui %0 : i1 to i32
    %c0_i32_0 = arith.constant 0 : i32
    %2 = arith.cmpi ne, %1, %c0_i32_0 : i32
    scf.if %2 {
      %cst_20 = arith.constant 0.000000e+00 : f32
      %22 = vector.broadcast %cst_20 : f32 to vector<1x1x256xf32>
      %c0_21 = arith.constant 0 : index
      %c0_22 = arith.constant 0 : index
      %c0_23 = arith.constant 0 : index
      %23 = vector.load %arg5[%c0_21, %c0_22, %c0_23] : memref<1x1x256xf32, #tpu.memory_space<vmem>>, vector<1x1x256xf32>
      tpu.vector_store %arg5[%c0_21, %c0_22, %c0_23], %22 {strides = array<i32>} : memref<1x1x256xf32, #tpu.memory_space<vmem>>, vector<1x1x256xf32>,
      %cst_24 = arith.constant 0.000000e+00 : f32
      %24 = vector.broadcast %cst_24 : f32 to vector<1x1x256xf32>
      %c0_25 = arith.constant 0 : index
      %c0_26 = arith.constant 0 : index
      %c0_27 = arith.constant 0 : index
      %25 = vector.load %arg6[%c0_25, %c0_26, %c0_27] : memref<1x1x256xf32, #tpu.memory_space<vmem>>, vector<1x1x256xf32>
      tpu.vector_store %arg6[%c0_25, %c0_26, %c0_27], %24 {strides = array<i32>} : memref<1x1x256xf32, #tpu.memory_space<vmem>>, vector<1x1x256xf32>,
    } else {
    }
    %c0 = arith.constant 0 : index
    %c0_1 = arith.constant 0 : index
    %3 = vector.load %arg2[%c0, %c0_1] : memref<256x128xbf16, #tpu.memory_space<vmem>>, vector<256x128xbf16>
    %c0_2 = arith.constant 0 : index
    %c0_3 = arith.constant 0 : index
    %4 = vector.load %arg3[%c0_2, %c0_3] : memref<128x256xbf16, #tpu.memory_space<vmem>>, vector<128x256xbf16>
    %cst = arith.constant dense<0.000000e+00> : vector<256x256xf32>
    %5 = tpu.matmul %3, %4, %cst {dimension_numbers = #tpu.dot_dimension_numbers<[1], [0], [0], [1], [0, 0, 1, 1], [], []>} : vector<256x128xbf16>, vector<128x256xbf16>, vector<256x256xf32> -> vector<256x256xf32>
    %c0_4 = arith.constant 0 : index
    %c0_5 = arith.constant 0 : index
    %6 = vector.load %arg4[%c0_4, %c0_5] : memref<1x256xf32, #tpu.memory_space<vmem>>, vector<1x256xf32>
    %7 = vector.broadcast %6 : vector<1x256xf32> to vector<256x256xf32>
    %8 = arith.addf %5, %7 : vector<256x256xf32>
    %c0_6 = arith.constant 0 : index
    %c0_7 = arith.constant 0 : index
    %c0_8 = arith.constant 0 : index
    %9 = vector.load %arg5[%c0_6, %c0_7, %c0_8] : memref<1x1x256xf32, #tpu.memory_space<vmem>>, vector<1x1x256xf32>
    %cst_9 = arith.constant dense<0.000000e+00> : vector<256xf32>
    %10 = vector.multi_reduction <add>, %8, %cst_9 [0] : vector<256x256xf32> to vector<256xf32>
    %11 = vector.shape_cast %10 : vector<256xf32> to vector<1x256xf32>
    %12 = vector.shape_cast %11 : vector<1x256xf32> to vector<1x1x256xf32>
    %13 = arith.addf %9, %12 : vector<1x1x256xf32>
    %c0_10 = arith.constant 0 : index
    %c0_11 = arith.constant 0 : index
    %c0_12 = arith.constant 0 : index
    %14 = vector.load %arg5[%c0_10, %c0_11, %c0_12] : memref<1x1x256xf32, #tpu.memory_space<vmem>>, vector<1x1x256xf32>
    tpu.vector_store %arg5[%c0_10, %c0_11, %c0_12], %13 {strides = array<i32>} : memref<1x1x256xf32, #tpu.memory_space<vmem>>, vector<1x1x256xf32>,
    %c0_13 = arith.constant 0 : index
    %c0_14 = arith.constant 0 : index
    %c0_15 = arith.constant 0 : index
    %15 = vector.load %arg6[%c0_13, %c0_14, %c0_15] : memref<1x1x256xf32, #tpu.memory_space<vmem>>, vector<1x1x256xf32>
    %16 = arith.mulf %8, %8 : vector<256x256xf32>
    %cst_16 = arith.constant dense<0.000000e+00> : vector<256xf32>
    %17 = vector.multi_reduction <add>, %16, %cst_16 [0] : vector<256x256xf32> to vector<256xf32>
    %18 = vector.shape_cast %17 : vector<256xf32> to vector<1x256xf32>
    %19 = vector.shape_cast %18 : vector<1x256xf32> to vector<1x1x256xf32>
    %20 = arith.addf %15, %19 : vector<1x1x256xf32>
    %c0_17 = arith.constant 0 : index
    %c0_18 = arith.constant 0 : index
    %c0_19 = arith.constant 0 : index
    %21 = vector.load %arg6[%c0_17, %c0_18, %c0_19] : memref<1x1x256xf32, #tpu.memory_space<vmem>>, vector<1x1x256xf32>
    tpu.vector_store %arg6[%c0_17, %c0_18, %c0_19], %20 {strides = array<i32>} : memref<1x1x256xf32, #tpu.memory_space<vmem>>, vector<1x1x256xf32>,
    return
  }
  func.func @transform_0(%arg0: i32, %arg1: i32) -> (i32, i32) {
    %c1_i32 = arith.constant 1 : i32
    %0 = arith.muli %arg0, %c1_i32 : i32
    %1 = arith.addi %0, %arg1 : i32
    %c0_i32 = arith.constant 0 : i32
    %c0_i32_0 = arith.constant 0 : i32
    return %1, %c0_i32 : i32, i32
  }
  func.func @transform_1(%arg0: i32, %arg1: i32) -> (i32, i32) {
    %c0_i32 = arith.constant 0 : i32
    %c0_i32_0 = arith.constant 0 : i32
    %c0_i32_1 = arith.constant 0 : i32
    return %c0_i32, %c0_i32_0 : i32, i32
  }
  func.func @transform_2(%arg0: i32, %arg1: i32) -> (i32, i32) {
    %c0_i32 = arith.constant 0 : i32
    %c0_i32_0 = arith.constant 0 : i32
    %c0_i32_1 = arith.constant 0 : i32
    return %c0_i32, %c0_i32_0 : i32, i32
  }
  func.func @transform_3(%arg0: i32, %arg1: i32) -> (i32, i32, i32) {
    %c0_i32 = arith.constant 0 : i32
    %c0_i32_0 = arith.constant 0 : i32
    %c0_i32_1 = arith.constant 0 : i32
    return %arg0, %c0_i32, %c0_i32_0 : i32, i32, i32
  }
  func.func @transform_4(%arg0: i32, %arg1: i32) -> (i32, i32, i32) {
    %c0_i32 = arith.constant 0 : i32
    %c0_i32_0 = arith.constant 0 : i32
    %c0_i32_1 = arith.constant 0 : i32
    return %arg0, %c0_i32, %c0_i32_0 : i32, i32, i32
  }
}

module attributes {stable_mosaic.version = 11 : i64} {
  func.func @_apply_kernel(%arg0: i32, %arg1: memref<256x128xbf16, #tpu.memory_space<vmem>>, %arg2: memref<128x256xbf16, #tpu.memory_space<vmem>>, %arg3: memref<1x256xf32, #tpu.memory_space<vmem>>, %arg4: memref<2x1x256xf32, #tpu.memory_space<vmem>>, %arg5: memref<2x1x256xf32, #tpu.memory_space<vmem>>, %arg6: memref<1x256xf32, #tpu.memory_space<vmem>>, %arg7: memref<1x256xf32, #tpu.memory_space<vmem>>, %arg8: memref<256x128xbf16, #tpu.memory_space<vmem>>, %arg9: memref<1x128xf32, #tpu.memory_space<vmem>>, %arg10: memref<256x128xf32, #tpu.memory_space<vmem>>) attributes {dimension_semantics = [#tpu.dimension_semantics<parallel>], iteration_bounds = array<i64: 2>, scalar_prefetch = 0 : i64, scratch_operands = 0 : i64, tpu.core_type = #tpu.core_type<tc>, window_params = [{transform_indices = @transform_0, window_bounds = array<i64: 256, 128>}, {pipeline_mode = #tpu.pipeline_mode<synchronous>, transform_indices = @transform_1, window_bounds = array<i64: 128, 256>}, {pipeline_mode = #tpu.pipeline_mode<synchronous>, transform_indices = @transform_2, window_bounds = array<i64: 1, 256>}, {pipeline_mode = #tpu.pipeline_mode<synchronous>, transform_indices = @transform_3, window_bounds = array<i64: 2, 1, 256>}, {pipeline_mode = #tpu.pipeline_mode<synchronous>, transform_indices = @transform_4, window_bounds = array<i64: 2, 1, 256>}, {pipeline_mode = #tpu.pipeline_mode<synchronous>, transform_indices = @transform_5, window_bounds = array<i64: 1, 256>}, {pipeline_mode = #tpu.pipeline_mode<synchronous>, transform_indices = @transform_6, window_bounds = array<i64: 1, 256>}, {pipeline_mode = #tpu.pipeline_mode<synchronous>, transform_indices = @transform_7, window_bounds = array<i64: 256, 128>}, {pipeline_mode = #tpu.pipeline_mode<synchronous>, transform_indices = @transform_8, window_bounds = array<i64: 1, 128>}, {transform_indices = @transform_9, window_bounds = array<i64: 256, 128>}]} {
    %c0 = arith.constant 0 : index
    %c0_0 = arith.constant 0 : index
    %c0_1 = arith.constant 0 : index
    %0 = vector.load %arg4[%c0, %c0_0, %c0_1] : memref<2x1x256xf32, #tpu.memory_space<vmem>>, vector<2x1x256xf32>
    %cst = arith.constant dense<0.000000e+00> : vector<1x256xf32>
    %1 = vector.multi_reduction <add>, %0, %cst [0] : vector<2x1x256xf32> to vector<1x256xf32>
    %c0_2 = arith.constant 0 : index
    %c0_3 = arith.constant 0 : index
    %c0_4 = arith.constant 0 : index
    %2 = vector.load %arg5[%c0_2, %c0_3, %c0_4] : memref<2x1x256xf32, #tpu.memory_space<vmem>>, vector<2x1x256xf32>
    %cst_5 = arith.constant dense<0.000000e+00> : vector<1x256xf32>
    %3 = vector.multi_reduction <add>, %2, %cst_5 [0] : vector<2x1x256xf32> to vector<1x256xf32>
    %cst_6 = arith.constant 0.001953125 : f32
    %4 = vector.broadcast %cst_6 : f32 to vector<1x256xf32>
    %5 = arith.mulf %1, %4 : vector<1x256xf32>
    %cst_7 = arith.constant 0.001953125 : f32
    %6 = vector.broadcast %cst_7 : f32 to vector<1x256xf32>
    %7 = arith.mulf %3, %6 : vector<1x256xf32>
    %8 = arith.mulf %5, %5 : vector<1x256xf32>
    %9 = arith.subf %7, %8 : vector<1x256xf32>
    %cst_8 = arith.constant 0.000000e+00 : f32
    %10 = vector.broadcast %cst_8 : f32 to vector<1x256xf32>
    %11 = arith.maximumf %9, %10 : vector<1x256xf32>
    %c0_9 = arith.constant 0 : index
    %c0_10 = arith.constant 0 : index
    %12 = vector.load %arg6[%c0_9, %c0_10] : memref<1x256xf32, #tpu.memory_space<vmem>>, vector<1x256xf32>
    %cst_11 = arith.constant 9.99999974E-6 : f32
    %13 = vector.broadcast %cst_11 : f32 to vector<1x256xf32>
    %14 = arith.addf %11, %13 : vector<1x256xf32>
    %15 = math.rsqrt %14 : vector<1x256xf32>
    %16 = arith.mulf %12, %15 : vector<1x256xf32>
    %c0_12 = arith.constant 0 : index
    %c0_13 = arith.constant 0 : index
    %17 = vector.load %arg7[%c0_12, %c0_13] : memref<1x256xf32, #tpu.memory_space<vmem>>, vector<1x256xf32>
    %18 = arith.mulf %5, %16 : vector<1x256xf32>
    %19 = arith.subf %17, %18 : vector<1x256xf32>
    %c0_14 = arith.constant 0 : index
    %c0_15 = arith.constant 0 : index
    %20 = vector.load %arg1[%c0_14, %c0_15] : memref<256x128xbf16, #tpu.memory_space<vmem>>, vector<256x128xbf16>
    %c0_16 = arith.constant 0 : index
    %c0_17 = arith.constant 0 : index
    %21 = vector.load %arg2[%c0_16, %c0_17] : memref<128x256xbf16, #tpu.memory_space<vmem>>, vector<128x256xbf16>
    %cst_18 = arith.constant dense<0.000000e+00> : vector<256x256xf32>
    %22 = tpu.matmul %20, %21, %cst_18 {dimension_numbers = #tpu.dot_dimension_numbers<[1], [0], [0], [1], [0, 0, 1, 1], [], []>} : vector<256x128xbf16>, vector<128x256xbf16>, vector<256x256xf32> -> vector<256x256xf32>
    %c0_19 = arith.constant 0 : index
    %c0_20 = arith.constant 0 : index
    %23 = vector.load %arg3[%c0_19, %c0_20] : memref<1x256xf32, #tpu.memory_space<vmem>>, vector<1x256xf32>
    %24 = vector.broadcast %23 : vector<1x256xf32> to vector<256x256xf32>
    %25 = arith.addf %22, %24 : vector<256x256xf32>
    %26 = vector.broadcast %16 : vector<1x256xf32> to vector<256x256xf32>
    %27 = arith.mulf %25, %26 : vector<256x256xf32>
    %28 = vector.broadcast %19 : vector<1x256xf32> to vector<256x256xf32>
    %29 = arith.addf %27, %28 : vector<256x256xf32>
    %cst_21 = arith.constant 5.000000e-01 : f32
    %30 = vector.broadcast %cst_21 : f32 to vector<256x256xf32>
    %31 = arith.mulf %30, %29 : vector<256x256xf32>
    %cst_22 = arith.constant 4.471500e-02 : f32
    %32 = vector.broadcast %cst_22 : f32 to vector<256x256xf32>
    %33 = arith.mulf %32, %29 : vector<256x256xf32>
    %34 = arith.mulf %33, %29 : vector<256x256xf32>
    %35 = arith.mulf %34, %29 : vector<256x256xf32>
    %36 = arith.addf %29, %35 : vector<256x256xf32>
    %cst_23 = arith.constant 0.797884583 : f32
    %37 = vector.broadcast %cst_23 : f32 to vector<256x256xf32>
    %38 = arith.mulf %37, %36 : vector<256x256xf32>
    %39 = math.tanh %38 : vector<256x256xf32>
    %cst_24 = arith.constant 1.000000e+00 : f32
    %40 = vector.broadcast %cst_24 : f32 to vector<256x256xf32>
    %41 = arith.addf %40, %39 : vector<256x256xf32>
    %42 = arith.mulf %31, %41 : vector<256x256xf32>
    %43 = arith.truncf %42 : vector<256x256xf32> to vector<256x256xbf16>
    %c0_25 = arith.constant 0 : index
    %c0_26 = arith.constant 0 : index
    %44 = vector.load %arg8[%c0_25, %c0_26] : memref<256x128xbf16, #tpu.memory_space<vmem>>, vector<256x128xbf16>
    %cst_27 = arith.constant dense<0.000000e+00> : vector<256x128xf32>
    %45 = tpu.matmul %43, %44, %cst_27 {dimension_numbers = #tpu.dot_dimension_numbers<[1], [0], [0], [1], [0, 0, 1, 1], [], []>} : vector<256x256xbf16>, vector<256x128xbf16>, vector<256x128xf32> -> vector<256x128xf32>
    %c0_28 = arith.constant 0 : index
    %c0_29 = arith.constant 0 : index
    %46 = vector.load %arg9[%c0_28, %c0_29] : memref<1x128xf32, #tpu.memory_space<vmem>>, vector<1x128xf32>
    %47 = vector.broadcast %46 : vector<1x128xf32> to vector<256x128xf32>
    %48 = arith.addf %45, %47 : vector<256x128xf32>
    %49 = arith.extf %20 : vector<256x128xbf16> to vector<256x128xf32>
    %50 = arith.addf %48, %49 : vector<256x128xf32>
    %c0_30 = arith.constant 0 : index
    %c0_31 = arith.constant 0 : index
    %51 = vector.load %arg10[%c0_30, %c0_31] : memref<256x128xf32, #tpu.memory_space<vmem>>, vector<256x128xf32>
    tpu.vector_store %arg10[%c0_30, %c0_31], %50 {strides = array<i32>} : memref<256x128xf32, #tpu.memory_space<vmem>>, vector<256x128xf32>,
    return
  }
  func.func @transform_0(%arg0: i32) -> (i32, i32) {
    %c0_i32 = arith.constant 0 : i32
    %c0_i32_0 = arith.constant 0 : i32
    return %arg0, %c0_i32 : i32, i32
  }
  func.func @transform_1(%arg0: i32) -> (i32, i32) {
    %c0_i32 = arith.constant 0 : i32
    %c0_i32_0 = arith.constant 0 : i32
    %c0_i32_1 = arith.constant 0 : i32
    return %c0_i32, %c0_i32_0 : i32, i32
  }
  func.func @transform_2(%arg0: i32) -> (i32, i32) {
    %c0_i32 = arith.constant 0 : i32
    %c0_i32_0 = arith.constant 0 : i32
    %c0_i32_1 = arith.constant 0 : i32
    return %c0_i32, %c0_i32_0 : i32, i32
  }
  func.func @transform_3(%arg0: i32) -> (i32, i32, i32) {
    %c0_i32 = arith.constant 0 : i32
    %c0_i32_0 = arith.constant 0 : i32
    %c0_i32_1 = arith.constant 0 : i32
    %c0_i32_2 = arith.constant 0 : i32
    return %c0_i32, %c0_i32_0, %c0_i32_1 : i32, i32, i32
  }
  func.func @transform_4(%arg0: i32) -> (i32, i32, i32) {
    %c0_i32 = arith.constant 0 : i32
    %c0_i32_0 = arith.constant 0 : i32
    %c0_i32_1 = arith.constant 0 : i32
    %c0_i32_2 = arith.constant 0 : i32
    return %c0_i32, %c0_i32_0, %c0_i32_1 : i32, i32, i32
  }
  func.func @transform_5(%arg0: i32) -> (i32, i32) {
    %c0_i32 = arith.constant 0 : i32
    %c0_i32_0 = arith.constant 0 : i32
    %c0_i32_1 = arith.constant 0 : i32
    return %c0_i32, %c0_i32_0 : i32, i32
  }
  func.func @transform_6(%arg0: i32) -> (i32, i32) {
    %c0_i32 = arith.constant 0 : i32
    %c0_i32_0 = arith.constant 0 : i32
    %c0_i32_1 = arith.constant 0 : i32
    return %c0_i32, %c0_i32_0 : i32, i32
  }
  func.func @transform_7(%arg0: i32) -> (i32, i32) {
    %c0_i32 = arith.constant 0 : i32
    %c0_i32_0 = arith.constant 0 : i32
    %c0_i32_1 = arith.constant 0 : i32
    return %c0_i32, %c0_i32_0 : i32, i32
  }
  func.func @transform_8(%arg0: i32) -> (i32, i32) {
    %c0_i32 = arith.constant 0 : i32
    %c0_i32_0 = arith.constant 0 : i32
    %c0_i32_1 = arith.constant 0 : i32
    return %c0_i32, %c0_i32_0 : i32, i32
  }
  func.func @transform_9(%arg0: i32) -> (i32, i32) {
    %c0_i32 = arith.constant 0 : i32
    %c0_i32_0 = arith.constant 0 : i32
    return %arg0, %c0_i32 : i32, i32
  }
}

</mosaic_0001>

<llo_original>
// kernel: two_layer_nn.2
$region0: #{two_layer_nn.2}
  #allocation0 [shape = 'u32[]', space=smem, size = 0x4, offset = 0x4, fixed_abs, tag = 'smem constant byte address 0x4 - core index']
  #allocation1 [shape = 'u32[72,128]{1,0:T(1,128)}', space=vmem, size = 0x9000, scoped, tag = 'internal scratch']
  %s0 = inlined_call_operand.vmem [shape: bf16[512,128], index: 0, kind: input, shape index: {}]
  %s1 = inlined_call_operand.vmem [shape: bf16[128,256], index: 1, kind: input, shape index: {}]
  %s2 = inlined_call_operand.vmem [shape: f32[1,256], index: 2, kind: input, shape index: {}]
  %s3 = inlined_call_operand.vmem [shape: f32[2,1,256], index: 3, kind: output, shape index: {0}]
  %s4 = inlined_call_operand.vmem [shape: f32[2,1,256], index: 4, kind: output, shape index: {1}]
  %5 = xla_tuple %s3, %s4
  %s6 = sld [smem:[#allocation0]]
  $region57: #{two_layer_nn.2} parent=0
    _
  %s8 = ssub.s32 1, %s6
  %s9 = scalar_select 0, %s8, %s6
  loop: start=0, step=1, limit=4
  $region2: #{two_layer_nn.2} parent=0 // loop_pre_header
    _
  $region3: #{two_layer_nn.2} parent=0 // loop_header
    %s11 = sphi 0, %s15
    %p12 = scmp.ge.s32.totalorder %s11, 4
    %s18 = sphi 0, %s30
    %s19 = sphi 0, %s26
    %s20 = sphi 0, %s18
    %s21 = sphi 0, %s19
    %s22 = sphi 0, %s20
    %s23 = sphi 0, %s21
    %s35 = sphi 0, %s37
    %s38 = sphi 0, %s35
    %s39 = sphi 0, %s38
    %s55 = sphi 0, %s39
    %s59 = sphi 0, %s59
    %s61 = sphi 0, %s59
    %s62 = sphi 0, %s61
    %s76 = sphi 0, %s62
    %s80 = sphi 0, %s80
    %s82 = sphi 0, %s80
    %s83 = sphi 0, %s82
    %s97 = sphi 0, %s83
    %s103 = sphi 0, %s105
    %s106 = sphi 0, %s103
    %s107 = sphi 0, %s106
    %s123 = sphi 0, %s107
    %s129 = sphi 0, %s131
    %s132 = sphi 0, %s129
    %s133 = sphi 0, %s132
    %s149 = sphi 0, %s133
  $region4: #{two_layer_nn.2} parent=0 // loop_header_branch
    %14 = sbr.rel (%p12) target = $region8
  $region5: #{two_layer_nn.2} parent=0 // loop_body
    %s16 = ssub.s32 %s11, 1
    %s17 = ssub.s32 %s11, 2
    %s24 = sadd.s32 1, %s19
    %p25 = scmp.ge.s32.totalorder %s24, 1
    %s26 = scalar_select %p25, 0, %s24
    %s27 = sadd.s32 1, %s18
    %s28 = scalar_select %p25, %s27, %s18
    %p29 = scmp.ge.s32.totalorder %s28, 2
    %s30 = scalar_select %p29, 0, %s28
    %s31 = sadd.s32 %s18, %s19
    %s32 = sadd.s32 %s30, %s26
    %s33 = ssub.s32 %s31, %s32
    %p34 = scmp.eq.s32.totalorder %s33, 0
    %s36 = sadd.s32 %s35, 1
    %s37 = scalar_select %p34, %s35, %s36
    %p40 = pneg %p34
    %p41 = scmp.eq.s32.totalorder %s11, 1
    %p42 = por %p40, %p41
    %p43 = scmp.ne.s32.totalorder %s35, %s38
    %p44 = scmp.eq.s32.totalorder %s11, 0
    %p45 = por %p43, %p44
    %p46 = scmp.ne.s32.totalorder %s35, %s38
    %p47 = scmp.eq.s32.totalorder %s16, 1
    %p48 = por %p46, %p47
    %p49 = scmp.ne.s32.totalorder %s38, %s39
    %p50 = scmp.eq.s32.totalorder %s16, 0
    %p51 = por %p49, %p50
    %p52 = scmp.ne.s32.totalorder %s38, %s39
    %p53 = scmp.eq.s32.totalorder %s17, 1
    %p54 = por %p52, %p53
    %p56 = scmp.ne.s32.totalorder %s39, %s55
    %p57 = scmp.eq.s32.totalorder %s17, 0
    %p58 = por %p56, %p57
    %s60 = sadd.s32 %s59, 1
    %p63 = scmp.eq.s32.totalorder %s11, 1
    %p64 = scmp.ne.s32.totalorder %s59, %s61
    %p65 = scmp.eq.s32.totalorder %s11, 0
    %p66 = por %p64, %p65
    %p67 = scmp.ne.s32.totalorder %s59, %s61
    %p68 = scmp.eq.s32.totalorder %s16, 1
    %p69 = por %p67, %p68
    %p70 = scmp.ne.s32.totalorder %s61, %s62
    %p71 = scmp.eq.s32.totalorder %s16, 0
    %p72 = por %p70, %p71
    %p73 = scmp.ne.s32.totalorder %s61, %s62
    %p74 = scmp.eq.s32.totalorder %s17, 1
    %p75 = por %p73, %p74
    %p77 = scmp.ne.s32.totalorder %s62, %s76
    %p78 = scmp.eq.s32.totalorder %s17, 0
    %p79 = por %p77, %p78
    %s81 = sadd.s32 %s80, 1
    %p84 = scmp.eq.s32.totalorder %s11, 1
    %p85 = scmp.ne.s32.totalorder %s80, %s82
    %p86 = scmp.eq.s32.totalorder %s11, 0
    %p87 = por %p85, %p86
    %p88 = scmp.ne.s32.totalorder %s80, %s82
    %p89 = scmp.eq.s32.totalorder %s16, 1
    %p90 = por %p88, %p89
    %p91 = scmp.ne.s32.totalorder %s82, %s83
    %p92 = scmp.eq.s32.totalorder %s16, 0
    %p93 = por %p91, %p92
    %p94 = scmp.ne.s32.totalorder %s82, %s83
    %p95 = scmp.eq.s32.totalorder %s17, 1
    %p96 = por %p94, %p95
    %p98 = scmp.ne.s32.totalorder %s83, %s97
    %p99 = scmp.eq.s32.totalorder %s17, 0
    %p100 = por %p98, %p99
    %s101 = ssub.s32 %s18, %s30
    %p102 = scmp.eq.s32.totalorder %s101, 0
    %s104 = sadd.s32 %s103, 1
    %s105 = scalar_select %p102, %s103, %s104
    %p108 = pneg %p102
    %p109 = scmp.eq.s32.totalorder %s11, 1
    %p110 = por %p108, %p109
    %p111 = scmp.ne.s32.totalorder %s103, %s106
    %p112 = scmp.eq.s32.totalorder %s11, 0
    %p113 = por %p111, %p112
    %p114 = scmp.ne.s32.totalorder %s103, %s106
    %p115 = scmp.eq.s32.totalorder %s16, 1
    %p116 = por %p114, %p115
    %p117 = scmp.ne.s32.totalorder %s106, %s107
    %p118 = scmp.eq.s32.totalorder %s16, 0
    %p119 = por %p117, %p118
    %p120 = scmp.ne.s32.totalorder %s106, %s107
    %p121 = scmp.eq.s32.totalorder %s17, 1
    %p122 = por %p120, %p121
    %p124 = scmp.ne.s32.totalorder %s107, %s123
    %p125 = scmp.eq.s32.totalorder %s17, 0
    %p126 = por %p124, %p125
    %s127 = ssub.s32 %s18, %s30
    %p128 = scmp.eq.s32.totalorder %s127, 0
    %s130 = sadd.s32 %s129, 1
    %s131 = scalar_select %p128, %s129, %s130
    %p134 = pneg %p128
    %p135 = scmp.eq.s32.totalorder %s11, 1
    %p136 = por %p134, %p135
    %p137 = scmp.ne.s32.totalorder %s129, %s132
    %p138 = scmp.eq.s32.totalorder %s11, 0
    %p139 = por %p137, %p138
    %p140 = scmp.ne.s32.totalorder %s129, %s132
    %p141 = scmp.eq.s32.totalorder %s16, 1
    %p142 = por %p140, %p141
    %p143 = scmp.ne.s32.totalorder %s132, %s133
    %p144 = scmp.eq.s32.totalorder %s16, 0
    %p145 = por %p143, %p144
    %p146 = scmp.ne.s32.totalorder %s132, %s133
    %p147 = scmp.eq.s32.totalorder %s17, 1
    %p148 = por %p146, %p147
    %p150 = scmp.ne.s32.totalorder %s133, %s149
    %p151 = scmp.eq.s32.totalorder %s17, 0
    %p152 = por %p150, %p151
    %p153 = scmp.le.s32.totalorder 1, %s11
    %p154 = scmp.lt.s32.totalorder %s11, 3
    %p155 = pnand %p153, %p154
    %p156 = pneg %p155
    // Predicated region
    $region9: #{two_layer_nn.2} parent=5 // pred_check
      _
    $region10: #{two_layer_nn.2} parent=5 // pred_check_branch
      %158 = sbr.rel (%p155) target = $region12
    $region11: #{two_layer_nn.2} parent=5 // pred_region
      %s159 = ssub.s32 %s11, 1
      // Predicated region
      $region13: #{two_layer_nn.2} parent=11 // pred_check
        %p160 = pneg %p72
      $region14: #{two_layer_nn.2} parent=11 // pred_check_branch
        %162 = sbr.rel (%p160) target = $region16
      $region15: #{two_layer_nn.2} parent=11 // pred_region
        _
      $region16: #{two_layer_nn.2} parent=11 // pred_fallthru
        _
      // Predicated region
      $region17: #{two_layer_nn.2} parent=11 // pred_check
        %p163 = pneg %p93
      $region18: #{two_layer_nn.2} parent=11 // pred_check_branch
        %165 = sbr.rel (%p163) target = $region20
      $region19: #{two_layer_nn.2} parent=11 // pred_region
        _
      $region20: #{two_layer_nn.2} parent=11 // pred_fallthru
        _
    $region12: #{two_layer_nn.2} parent=5 // pred_fallthru
      _
    %p166 = scmp.lt.s32.totalorder %s11, 2
    // Predicated region
    $region21: #{two_layer_nn.2} parent=5 // pred_check
      %p167 = pneg %p166
    $region22: #{two_layer_nn.2} parent=5 // pred_check_branch
      %169 = sbr.rel (%p167) target = $region24
    $region23: #{two_layer_nn.2} parent=5 // pred_region
      // Predicated region
      $region25: #{two_layer_nn.2} parent=23 // pred_check
        %p170 = pneg %p45
      $region26: #{two_layer_nn.2} parent=23 // pred_check_branch
        %172 = sbr.rel (%p170) target = $region28
      $region27: #{two_layer_nn.2} parent=23 // pred_region
        %s173 = sadd.s32 %s18, %s19
        %s174 = smul.u32 32, %s173
        %p175 = scmp.lt.s32.totalorder %s174, 63
        %s176 = scalar_select %p175, %s174, 63
        %s177 = smul.addr %s176, 4
        %s178 = scalar_lea.vmem %s0, %s177
        %s179 = sadd.s32 %s18, %s19
        %s180 = smul.u32 32, %s179
      $region28: #{two_layer_nn.2} parent=23 // pred_fallthru
        _
    $region24: #{two_layer_nn.2} parent=5 // pred_fallthru
      _
    %p181 = scmp.le.s32.totalorder 1, %s11
    %p182 = scmp.lt.s32.totalorder %s11, 3
    %p183 = pnand %p181, %p182
    %p184 = pneg %p183
    // Predicated region
    $region29: #{two_layer_nn.2} parent=5 // pred_check
      _
    $region30: #{two_layer_nn.2} parent=5 // pred_check_branch
      %186 = sbr.rel (%p183) target = $region32
    $region31: #{two_layer_nn.2} parent=5 // pred_region
      %s187 = ssub.s32 %s11, 1
      %s188 = sadd.s32 %s20, %s21
      %s189 = smul.u32 32, %s188
      %p190 = scmp.lt.s32.totalorder %s189, 63
      %s191 = scalar_select %p190, %s189, 63
      %s192 = smul.addr %s191, 4
      %s193 = scalar_lea.vmem %s0, %s192
      %p194 = pneg %p51
      %p195 = pneg %p48
      %p196 = pneg %p72
      %p197 = pneg %p69
      %p198 = pneg %p93
      %p199 = pneg %p90
      %p200 = pneg %p119
      %p201 = pneg %p116
      %p202 = scmp.lt.s32.totalorder %s20, 1
      %s203 = scalar_select %p202, %s20, 1
      %s204 = smul.addr %s203, 2
      %s205 = scalar_lea.vmem %s3, %s204
      %p206 = pneg %p145
      %p207 = pneg %p142
      %p208 = scmp.lt.s32.totalorder %s20, 1
      %s209 = scalar_select %p208, %s20, 1
      %s210 = smul.addr %s209, 2
      %s211 = scalar_lea.vmem %s4, %s210
      %s212 = sadd.s32 %s20, %s21
      %s213 = smul.u32 32, %s212
      %p214 = scmp.lt.s32.totalorder %s213, 63
      %s215 = scalar_select %p214, %s213, 63
      %s216 = smul.addr %s215, 4
      %s217 = scalar_lea.vmem %s0, %s216
      %s218 = sadd.s32 %s20, %s21
      %s219 = smul.u32 32, %s218
      %p220 = scmp.lt.s32.totalorder %s20, 1
      %s221 = scalar_select %p220, %s20, 1
      %s222 = smul.addr %s221, 2
      %s223 = scalar_lea.vmem %s3, %s222
      %p224 = scmp.lt.s32.totalorder %s20, 1
      %s225 = scalar_select %p224, %s20, 1
      %s226 = smul.addr %s225, 2
      %s227 = scalar_lea.vmem %s4, %s226
      %p228 = scmp.eq.s32.totalorder %s21, 0
      // Predicated region
      $region33: #{two_layer_nn.2} parent=31 // pred_check
        %p229 = pneg %p228
      $region34: #{two_layer_nn.2} parent=31 // pred_check_branch
        %231 = sbr.rel (%p229) target = $region36
      $region35: #{two_layer_nn.2} parent=31 // pred_region
        %v232 = vlaneseq
        %vm233 = vcmp.ge.s32.totalorder %v232, 0
        %vm234 = vcmp.lt.s32.totalorder %v232, 256
        %vm235 = vmand %vm233, %vm234
        %236 = vst.msk [vmem:[%s223] sm:$0x3] %vm235, 0.0
        %237 = vst.msk [vmem:[%s227] sm:$0x3] %vm235, 0.0
      $region36: #{two_layer_nn.2} parent=31 // pred_fallthru
        _
      %v238 = vld [vmem:[%s217] sm:$0xf]
      %v239 = vld [vmem:[%s217 + $0x4] sm:$0xf]
      %v240 = vld [vmem:[%s217 + $0x8] sm:$0xf]
      %v241 = vld [vmem:[%s217 + $0xc] sm:$0xf]
      %v242 = vld [vmem:[%s217 + $0x10] sm:$0xf]
      %v243 = vld [vmem:[%s217 + $0x14] sm:$0xf]
      %v244 = vld [vmem:[%s217 + $0x18] sm:$0xf]
      %v245 = vld [vmem:[%s217 + $0x1c] sm:$0xf]
      %v246 = vld [vmem:[%s217 + $0x20] sm:$0xf]
      %v247 = vld [vmem:[%s217 + $0x24] sm:$0xf]
      %v248 = vld [vmem:[%s217 + $0x28] sm:$0xf]
      %v249 = vld [vmem:[%s217 + $0x2c] sm:$0xf]
      %v250 = vld [vmem:[%s217 + $0x30] sm:$0xf]
      %v251 = vld [vmem:[%s217 + $0x34] sm:$0xf]
      %v252 = vld [vmem:[%s217 + $0x38] sm:$0xf]
      %v253 = vld [vmem:[%s217 + $0x3c] sm:$0xf]
      %v254 = vld [vmem:[%s217 + $0x40] sm:$0xf]
      %v255 = vld [vmem:[%s217 + $0x44] sm:$0xf]
      %v256 = vld [vmem:[%s217 + $0x48] sm:$0xf]
      %v257 = vld [vmem:[%s217 + $0x4c] sm:$0xf]
      %v258 = vld [vmem:[%s217 + $0x50] sm:$0xf]
      %v259 = vld [vmem:[%s217 + $0x54] sm:$0xf]
      %v260 = vld [vmem:[%s217 + $0x58] sm:$0xf]
      %v261 = vld [vmem:[%s217 + $0x5c] sm:$0xf]
      %v262 = vld [vmem:[%s217 + $0x60] sm:$0xf]
      %v263 = vld [vmem:[%s217 + $0x64] sm:$0xf]
      %v264 = vld [vmem:[%s217 + $0x68] sm:$0xf]
      %v265 = vld [vmem:[%s217 + $0x6c] sm:$0xf]
      %v266 = vld [vmem:[%s217 + $0x70] sm:$0xf]
      %v267 = vld [vmem:[%s217 + $0x74] sm:$0xf]
      %v268 = vld [vmem:[%s217 + $0x78] sm:$0xf]
      %v269 = vld [vmem:[%s217 + $0x7c] sm:$0xf]
      %v270 = vld [vmem:[%s1] sm:$0xff]
      %v271 = vld [vmem:[%s1 + $0x8] sm:$0xff]
      %v272 = vld [vmem:[%s1 + $0x10] sm:$0xff]
      %v273 = vld [vmem:[%s1 + $0x18] sm:$0xff]
      %v274 = vld [vmem:[%s1 + $0x20] sm:$0xff]
      %v275 = vld [vmem:[%s1 + $0x28] sm:$0xff]
      %v276 = vld [vmem:[%s1 + $0x30] sm:$0xff]
      %v277 = vld [vmem:[%s1 + $0x38] sm:$0xff]
      %v278 = vld [vmem:[%s1 + $0x40] sm:$0xff]
      %v279 = vld [vmem:[%s1 + $0x48] sm:$0xff]
      %v280 = vld [vmem:[%s1 + $0x50] sm:$0xff]
      %v281 = vld [vmem:[%s1 + $0x58] sm:$0xff]
      %v282 = vld [vmem:[%s1 + $0x60] sm:$0xff]
      %v283 = vld [vmem:[%s1 + $0x68] sm:$0xff]
      %v284 = vld [vmem:[%s1 + $0x70] sm:$0xff]
      %v285 = vld [vmem:[%s1 + $0x78] sm:$0xff]
      %v286 = vld [vmem:[%s2] sm:$0x3]
      %v288 = vperm.slane %v286, 0
      %v289 = vperm.slane %v286, 1
      %v324 = vunpack.c.l.b16 %v238
      %v325 = vunpack.c.l.b16 %v239
      %v326 = vunpack.c.l.b16 %v240
      %v327 = vunpack.c.l.b16 %v241
      %v328 = vunpack.c.l.b16 %v242
      %v329 = vunpack.c.l.b16 %v243
      %v330 = vunpack.c.l.b16 %v244
      %v331 = vunpack.c.l.b16 %v245
      %v332 = vunpack.c.l.b16 %v246
      %v333 = vunpack.c.l.b16 %v247
      %v334 = vunpack.c.l.b16 %v248
      %v335 = vunpack.c.l.b16 %v249
      %v336 = vunpack.c.l.b16 %v250
      %v337 = vunpack.c.l.b16 %v251
      %v338 = vunpack.c.l.b16 %v252
      %v339 = vunpack.c.l.b16 %v253
      %v340 = vunpack.c.l.b16 %v254
      %v341 = vunpack.c.l.b16 %v255
      %v342 = vunpack.c.l.b16 %v256
      %v343 = vunpack.c.l.b16 %v257
      %v344 = vunpack.c.l.b16 %v258
      %v345 = vunpack.c.l.b16 %v259
      %v346 = vunpack.c.l.b16 %v260
      %v347 = vunpack.c.l.b16 %v261
      %v348 = vunpack.c.l.b16 %v262
      %v349 = vunpack.c.l.b16 %v263
      %v350 = vunpack.c.l.b16 %v264
      %v351 = vunpack.c.l.b16 %v265
      %v352 = vunpack.c.l.b16 %v266
      %v353 = vunpack.c.l.b16 %v267
      %v354 = vunpack.c.l.b16 %v268
      %v355 = vunpack.c.l.b16 %v269
      %v356 = vpack.c.b16 %v325, %v324
      %v357 = vpack.c.b16 %v327, %v326
      %v358 = vpack.c.b16 %v329, %v328
      %v359 = vpack.c.b16 %v331, %v330
      %v360 = vpack.c.b16 %v333, %v332
      %v361 = vpack.c.b16 %v335, %v334
      %v362 = vpack.c.b16 %v337, %v336
      %v363 = vpack.c.b16 %v339, %v338
      %v364 = vpack.c.b16 %v341, %v340
      %v365 = vpack.c.b16 %v343, %v342
      %v366 = vpack.c.b16 %v345, %v344
      %v367 = vpack.c.b16 %v347, %v346
      %v368 = vpack.c.b16 %v349, %v348
      %v369 = vpack.c.b16 %v351, %v350
      %v370 = vpack.c.b16 %v353, %v352
      %v371 = vpack.c.b16 %v355, %v354
      %v404 = vunpack.c.l.b16 %v270
      %v405 = vunpack.c.h.b16 %v270
      %v406 = vunpack.c.l.b16 %v271
      %v407 = vunpack.c.h.b16 %v271
      %v408 = vunpack.c.l.b16 %v272
      %v409 = vunpack.c.h.b16 %v272
      %v410 = vunpack.c.l.b16 %v273
      %v411 = vunpack.c.h.b16 %v273
      %v412 = vunpack.c.l.b16 %v274
      %v413 = vunpack.c.h.b16 %v274
      %v414 = vunpack.c.l.b16 %v275
      %v415 = vunpack.c.h.b16 %v275
      %v416 = vunpack.c.l.b16 %v276
      %v417 = vunpack.c.h.b16 %v276
      %v418 = vunpack.c.l.b16 %v277
      %v419 = vunpack.c.h.b16 %v277
      %v420 = vunpack.c.l.b16 %v278
      %v421 = vunpack.c.h.b16 %v278
      %v422 = vunpack.c.l.b16 %v279
      %v423 = vunpack.c.h.b16 %v279
      %v424 = vunpack.c.l.b16 %v280
      %v425 = vunpack.c.h.b16 %v280
      %v426 = vunpack.c.l.b16 %v281
      %v427 = vunpack.c.h.b16 %v281
      %v428 = vunpack.c.l.b16 %v282
      %v429 = vunpack.c.h.b16 %v282
      %v430 = vunpack.c.l.b16 %v283
      %v431 = vunpack.c.h.b16 %v283
      %v432 = vunpack.c.l.b16 %v284
      %v433 = vunpack.c.h.b16 %v284
      %v434 = vunpack.c.l.b16 %v285
      %v435 = vunpack.c.h.b16 %v285
      %v436 = vpack.c.b16 %v406, %v404
      %v437 = vpack.c.b16 %v407, %v405
      %v438 = vpack.c.b16 %v410, %v408
      %v439 = vpack.c.b16 %v411, %v409
      %v440 = vpack.c.b16 %v414, %v412
      %v441 = vpack.c.b16 %v415, %v413
      %v442 = vpack.c.b16 %v418, %v416
      %v443 = vpack.c.b16 %v419, %v417
      %v444 = vpack.c.b16 %v422, %v420
      %v445 = vpack.c.b16 %v423, %v421
      %v446 = vpack.c.b16 %v426, %v424
      %v447 = vpack.c.b16 %v427, %v425
      %v448 = vpack.c.b16 %v430, %v428
      %v449 = vpack.c.b16 %v431, %v429
      %v450 = vpack.c.b16 %v434, %v432
      %v451 = vpack.c.b16 %v435, %v433
      %468 = vmatpush.bf16.msra.mxu0 %v450
      %469 = vmatpush.bf16.msra.mxu0 %v448
      %470 = vmatpush.bf16.msra.mxu0 %v446
      %471 = vmatpush.bf16.msra.mxu0 %v444
      %472 = vmatpush.bf16.msra.mxu0 %v442
      %473 = vmatpush.bf16.msra.mxu0 %v440
      %474 = vmatpush.bf16.msra.mxu0 %v438
      %475 = vmatpush.bf16.msra.mxu0 %v436
      %476 = vmatmul.bf16.gmra.mxu0 %v356
      %v477 = vpop.f32.mrf.mxu0
      %v478 = vadd.f32 %v288, %v477
      %v479 = vpop.f32.mrf.mxu0
      %v480 = vadd.f32 %v288, %v479
      %481 = vmatmul.bf16.gmra.mxu0 %v357
      %v482 = vpop.f32.mrf.mxu0
      %v483 = vadd.f32 %v288, %v482
      %v484 = vpop.f32.mrf.mxu0
      %v485 = vadd.f32 %v288, %v484
      %486 = vmatmul.bf16.gmra.mxu0 %v358
      %v487 = vpop.f32.mrf.mxu0
      %v488 = vadd.f32 %v288, %v487
      %v489 = vpop.f32.mrf.mxu0
      %v490 = vadd.f32 %v288, %v489
      %491 = vmatmul.bf16.gmra.mxu0 %v359
      %v492 = vpop.f32.mrf.mxu0
      %v493 = vadd.f32 %v288, %v492
      %v494 = vpop.f32.mrf.mxu0
      %v495 = vadd.f32 %v288, %v494
      %496 = vmatmul.bf16.gmra.mxu0 %v360
      %v497 = vpop.f32.mrf.mxu0
      %v498 = vadd.f32 %v288, %v497
      %v499 = vpop.f32.mrf.mxu0
      %v500 = vadd.f32 %v288, %v499
      %501 = vmatmul.bf16.gmra.mxu0 %v361
      %v502 = vpop.f32.mrf.mxu0
      %v503 = vadd.f32 %v288, %v502
      %v504 = vpop.f32.mrf.mxu0
      %v505 = vadd.f32 %v288, %v504
      %506 = vmatmul.bf16.gmra.mxu0 %v362
      %v507 = vpop.f32.mrf.mxu0
      %v508 = vadd.f32 %v288, %v507
      %v509 = vpop.f32.mrf.mxu0
      %v510 = vadd.f32 %v288, %v509
      %511 = vmatmul.bf16.gmra.mxu0 %v363
      %v512 = vpop.f32.mrf.mxu0
      %v513 = vadd.f32 %v288, %v512
      %v514 = vpop.f32.mrf.mxu0
      %v515 = vadd.f32 %v288, %v514
      %516 = vmatmul.bf16.gmra.mxu0 %v364
      %v517 = vpop.f32.mrf.mxu0
      %v518 = vadd.f32 %v288, %v517
      %v519 = vpop.f32.mrf.mxu0
      %v520 = vadd.f32 %v288, %v519
      %521 = vmatmul.bf16.gmra.mxu0 %v365
      %v522 = vpop.f32.mrf.mxu0
      %v523 = vadd.f32 %v288, %v522
      %v524 = vpop.f32.mrf.mxu0
      %v525 = vadd.f32 %v288, %v524
      %526 = vmatmul.bf16.gmra.mxu0 %v366
      %v527 = vpop.f32.mrf.mxu0
      %v528 = vadd.f32 %v288, %v527
      %v529 = vpop.f32.mrf.mxu0
      %v530 = vadd.f32 %v288, %v529
      %531 = vmatmul.bf16.gmra.mxu0 %v367
      %v532 = vpop.f32.mrf.mxu0
      %v533 = vadd.f32 %v288, %v532
      %v534 = vpop.f32.mrf.mxu0
      %v535 = vadd.f32 %v288, %v534
      %536 = vmatmul.bf16.gmra.mxu0 %v368
      %v537 = vpop.f32.mrf.mxu0
      %v538 = vadd.f32 %v288, %v537
      %v539 = vpop.f32.mrf.mxu0
      %v540 = vadd.f32 %v288, %v539
      %541 = vmatmul.bf16.gmra.mxu0 %v369
      %v542 = vpop.f32.mrf.mxu0
      %v543 = vadd.f32 %v288, %v542
      %v544 = vpop.f32.mrf.mxu0
      %v545 = vadd.f32 %v288, %v544
      %546 = vmatmul.bf16.gmra.mxu0 %v370
      %v547 = vpop.f32.mrf.mxu0
      %v548 = vadd.f32 %v288, %v547
      %v549 = vpop.f32.mrf.mxu0
      %v550 = vadd.f32 %v288, %v549
      %551 = vmatmul.bf16.gmra.mxu0 %v371
      %v552 = vpop.f32.mrf.mxu0
      %v553 = vadd.f32 %v288, %v552
      %v554 = vpop.f32.mrf.mxu0
      %v555 = vadd.f32 %v288, %v554
      %556 = vdwg.mxu0
      %557 = vmatpush.bf16.msra.mxu0 %v451
      %558 = vmatpush.bf16.msra.mxu0 %v449
      %559 = vmatpush.bf16.msra.mxu0 %v447
      %560 = vmatpush.bf16.msra.mxu0 %v445
      %561 = vmatpush.bf16.msra.mxu0 %v443
      %562 = vmatpush.bf16.msra.mxu0 %v441
      %563 = vmatpush.bf16.msra.mxu0 %v439
      %564 = vmatpush.bf16.msra.mxu0 %v437
      %565 = vmatmul.bf16.gmra.mxu0 %v356
      %v566 = vpop.f32.mrf.mxu0
      %v567 = vadd.f32 %v289, %v566
      %v568 = vpop.f32.mrf.mxu0
      %v569 = vadd.f32 %v289, %v568
      %570 = vmatmul.bf16.gmra.mxu0 %v357
      %v571 = vpop.f32.mrf.mxu0
      %v572 = vadd.f32 %v289, %v571
      %v573 = vpop.f32.mrf.mxu0
      %v574 = vadd.f32 %v289, %v573
      %575 = vmatmul.bf16.gmra.mxu0 %v358
      %v576 = vpop.f32.mrf.mxu0
      %v577 = vadd.f32 %v289, %v576
      %v578 = vpop.f32.mrf.mxu0
      %v579 = vadd.f32 %v289, %v578
      %580 = vmatmul.bf16.gmra.mxu0 %v359
      %v581 = vpop.f32.mrf.mxu0
      %v582 = vadd.f32 %v289, %v581
      %v583 = vpop.f32.mrf.mxu0
      %v584 = vadd.f32 %v289, %v583
      %585 = vmatmul.bf16.gmra.mxu0 %v360
      %v586 = vpop.f32.mrf.mxu0
      %v587 = vadd.f32 %v289, %v586
      %v588 = vpop.f32.mrf.mxu0
      %v589 = vadd.f32 %v289, %v588
      %590 = vmatmul.bf16.gmra.mxu0 %v361
      %v591 = vpop.f32.mrf.mxu0
      %v592 = vadd.f32 %v289, %v591
      %v593 = vpop.f32.mrf.mxu0
      %v594 = vadd.f32 %v289, %v593
      %595 = vmatmul.bf16.gmra.mxu0 %v362
      %v596 = vpop.f32.mrf.mxu0
      %v597 = vadd.f32 %v289, %v596
      %v598 = vpop.f32.mrf.mxu0
      %v599 = vadd.f32 %v289, %v598
      %600 = vmatmul.bf16.gmra.mxu0 %v363
      %v601 = vpop.f32.mrf.mxu0
      %v602 = vadd.f32 %v289, %v601
      %v603 = vpop.f32.mrf.mxu0
      %v604 = vadd.f32 %v289, %v603
      %605 = vmatmul.bf16.gmra.mxu0 %v364
      %v606 = vpop.f32.mrf.mxu0
      %v607 = vadd.f32 %v289, %v606
      %v608 = vpop.f32.mrf.mxu0
      %v609 = vadd.f32 %v289, %v608
      %610 = vmatmul.bf16.gmra.mxu0 %v365
      %v611 = vpop.f32.mrf.mxu0
      %v612 = vadd.f32 %v289, %v611
      %v613 = vpop.f32.mrf.mxu0
      %v614 = vadd.f32 %v289, %v613
      %615 = vmatmul.bf16.gmra.mxu0 %v366
      %v616 = vpop.f32.mrf.mxu0
      %v617 = vadd.f32 %v289, %v616
      %v618 = vpop.f32.mrf.mxu0
      %v619 = vadd.f32 %v289, %v618
      %620 = vmatmul.bf16.gmra.mxu0 %v367
      %v621 = vpop.f32.mrf.mxu0
      %v622 = vadd.f32 %v289, %v621
      %v623 = vpop.f32.mrf.mxu0
      %v624 = vadd.f32 %v289, %v623
      %625 = vmatmul.bf16.gmra.mxu0 %v368
      %v626 = vpop.f32.mrf.mxu0
      %v627 = vadd.f32 %v289, %v626
      %v628 = vpop.f32.mrf.mxu0
      %v629 = vadd.f32 %v289, %v628
      %630 = vmatmul.bf16.gmra.mxu0 %v369
      %v631 = vpop.f32.mrf.mxu0
      %v632 = vadd.f32 %v289, %v631
      %v633 = vpop.f32.mrf.mxu0
      %v634 = vadd.f32 %v289, %v633
      %635 = vmatmul.bf16.gmra.mxu0 %v370
      %v636 = vpop.f32.mrf.mxu0
      %v637 = vadd.f32 %v289, %v636
      %v638 = vpop.f32.mrf.mxu0
      %v639 = vadd.f32 %v289, %v638
      %640 = vmatmul.bf16.gmra.mxu0 %v371
      %v641 = vpop.f32.mrf.mxu0
      %v642 = vadd.f32 %v289, %v641
      %v643 = vpop.f32.mrf.mxu0
      %v644 = vadd.f32 %v289, %v643
      %645 = vdwg.mxu0
      %v646 = vld [vmem:[%s223] sm:$0x3]
      %v647 = vadd.f32 %v478, %v480
      %v648 = vadd.f32 %v647, %v483
      %v649 = vadd.f32 %v648, %v485
      %v650 = vadd.f32 %v649, %v488
      %v651 = vadd.f32 %v650, %v490
      %v652 = vadd.f32 %v651, %v493
      %v653 = vadd.f32 %v652, %v495
      %v654 = vadd.f32 %v653, %v498
      %v655 = vadd.f32 %v654, %v500
      %v656 = vadd.f32 %v655, %v503
      %v657 = vadd.f32 %v656, %v505
      %v658 = vadd.f32 %v657, %v508
      %v659 = vadd.f32 %v658, %v510
      %v660 = vadd.f32 %v659, %v513
      %v661 = vadd.f32 %v660, %v515
      %v662 = vadd.f32 %v661, %v518
      %v663 = vadd.f32 %v662, %v520
      %v664 = vadd.f32 %v663, %v523
      %v665 = vadd.f32 %v664, %v525
      %v666 = vadd.f32 %v665, %v528
      %v667 = vadd.f32 %v666, %v530
      %v668 = vadd.f32 %v667, %v533
      %v669 = vadd.f32 %v668, %v535
      %v670 = vadd.f32 %v669, %v538
      %v671 = vadd.f32 %v670, %v540
      %v672 = vadd.f32 %v671, %v543
      %v673 = vadd.f32 %v672, %v545
      %v674 = vadd.f32 %v673, %v548
      %v675 = vadd.f32 %v674, %v550
      %v676 = vadd.f32 %v675, %v553
      %v677 = vadd.f32 %v676, %v555
      %v678 = vrot.slane %v677, 4
      %v679 = vadd.f32 %v677, %v678
      %v680 = vrot.slane %v679, 2
      %v681 = vadd.f32 %v679, %v680
      %v682 = vrot.slane %v681, 1
      %v683 = vadd.f32 %v681, %v682
      %v684 = vadd.f32 %v567, %v569
      %v685 = vadd.f32 %v684, %v572
      %v686 = vadd.f32 %v685, %v574
      %v687 = vadd.f32 %v686, %v577
      %v688 = vadd.f32 %v687, %v579
      %v689 = vadd.f32 %v688, %v582
      %v690 = vadd.f32 %v689, %v584
      %v691 = vadd.f32 %v690, %v587
      %v692 = vadd.f32 %v691, %v589
      %v693 = vadd.f32 %v692, %v592
      %v694 = vadd.f32 %v693, %v594
      %v695 = vadd.f32 %v694, %v597
      %v696 = vadd.f32 %v695, %v599
      %v697 = vadd.f32 %v696, %v602
      %v698 = vadd.f32 %v697, %v604
      %v699 = vadd.f32 %v698, %v607
      %v700 = vadd.f32 %v699, %v609
      %v701 = vadd.f32 %v700, %v612
      %v702 = vadd.f32 %v701, %v614
      %v703 = vadd.f32 %v702, %v617
      %v704 = vadd.f32 %v703, %v619
      %v705 = vadd.f32 %v704, %v622
      %v706 = vadd.f32 %v705, %v624
      %v707 = vadd.f32 %v706, %v627
      %v708 = vadd.f32 %v707, %v629
      %v709 = vadd.f32 %v708, %v632
      %v710 = vadd.f32 %v709, %v634
      %v711 = vadd.f32 %v710, %v637
      %v712 = vadd.f32 %v711, %v639
      %v713 = vadd.f32 %v712, %v642
      %v714 = vadd.f32 %v713, %v644
      %v715 = vrot.slane %v714, 4
      %v716 = vadd.f32 %v714, %v715
      %v717 = vrot.slane %v716, 2
      %v718 = vadd.f32 %v716, %v717
      %v719 = vrot.slane %v718, 1
      %v720 = vadd.f32 %v718, %v719
      %v723 = vrot.slane %v720, 7
      %vm724 = vcmask 1040384
      %v725 = vsel %vm724, %v683, %v723
      %v727 = vadd.f32 %v646, %v725
      %v728 = vlaneseq
      %vm729 = vcmp.ge.s32.totalorder %v728, 0
      %vm730 = vcmp.lt.s32.totalorder %v728, 256
      %vm731 = vmand %vm729, %vm730
      %732 = vst.msk [vmem:[%s223] sm:$0x3] %vm731, %v727
      %v733 = vld [vmem:[%s227] sm:$0x3]
      %v734 = vmul.f32 %v478, %v478
      %v735 = vmul.f32 %v567, %v567
      %v736 = vmul.f32 %v480, %v480
      %v737 = vmul.f32 %v569, %v569
      %v738 = vmul.f32 %v483, %v483
      %v739 = vmul.f32 %v572, %v572
      %v740 = vmul.f32 %v485, %v485
      %v741 = vmul.f32 %v574, %v574
      %v742 = vmul.f32 %v488, %v488
      %v743 = vmul.f32 %v577, %v577
      %v744 = vmul.f32 %v490, %v490
      %v745 = vmul.f32 %v579, %v579
      %v746 = vmul.f32 %v493, %v493
      %v747 = vmul.f32 %v582, %v582
      %v748 = vmul.f32 %v495, %v495
      %v749 = vmul.f32 %v584, %v584
      %v750 = vmul.f32 %v498, %v498
      %v751 = vmul.f32 %v587, %v587
      %v752 = vmul.f32 %v500, %v500
      %v753 = vmul.f32 %v589, %v589
      %v754 = vmul.f32 %v503, %v503
      %v755 = vmul.f32 %v592, %v592
      %v756 = vmul.f32 %v505, %v505
      %v757 = vmul.f32 %v594, %v594
      %v758 = vmul.f32 %v508, %v508
      %v759 = vmul.f32 %v597, %v597
      %v760 = vmul.f32 %v510, %v510
      %v761 = vmul.f32 %v599, %v599
      %v762 = vmul.f32 %v513, %v513
      %v763 = vmul.f32 %v602, %v602
      %v764 = vmul.f32 %v515, %v515
      %v765 = vmul.f32 %v604, %v604
      %v766 = vmul.f32 %v518, %v518
      %v767 = vmul.f32 %v607, %v607
      %v768 = vmul.f32 %v520, %v520
      %v769 = vmul.f32 %v609, %v609
      %v770 = vmul.f32 %v523, %v523
      %v771 = vmul.f32 %v612, %v612
      %v772 = vmul.f32 %v525, %v525
      %v773 = vmul.f32 %v614, %v614
      %v774 = vmul.f32 %v528, %v528
      %v775 = vmul.f32 %v617, %v617
      %v776 = vmul.f32 %v530, %v530
      %v777 = vmul.f32 %v619, %v619
      %v778 = vmul.f32 %v533, %v533
      %v779 = vmul.f32 %v622, %v622
      %v780 = vmul.f32 %v535, %v535
      %v781 = vmul.f32 %v624, %v624
      %v782 = vmul.f32 %v538, %v538
      %v783 = vmul.f32 %v627, %v627
      %v784 = vmul.f32 %v540, %v540
      %v785 = vmul.f32 %v629, %v629
      %v786 = vmul.f32 %v543, %v543
      %v787 = vmul.f32 %v632, %v632
      %v788 = vmul.f32 %v545, %v545
      %v789 = vmul.f32 %v634, %v634
      %v790 = vmul.f32 %v548, %v548
      %v791 = vmul.f32 %v637, %v637
      %v792 = vmul.f32 %v550, %v550
      %v793 = vmul.f32 %v639, %v639
      %v794 = vmul.f32 %v553, %v553
      %v795 = vmul.f32 %v642, %v642
      %v796 = vmul.f32 %v555, %v555
      %v797 = vmul.f32 %v644, %v644
      %v798 = vadd.f32 %v734, %v736
      %v799 = vadd.f32 %v798, %v738
      %v800 = vadd.f32 %v799, %v740
      %v801 = vadd.f32 %v800, %v742
      %v802 = vadd.f32 %v801, %v744
      %v803 = vadd.f32 %v802, %v746
      %v804 = vadd.f32 %v803, %v748
      %v805 = vadd.f32 %v804, %v750
      %v806 = vadd.f32 %v805, %v752
      %v807 = vadd.f32 %v806, %v754
      %v808 = vadd.f32 %v807, %v756
      %v809 = vadd.f32 %v808, %v758
      %v810 = vadd.f32 %v809, %v760
      %v811 = vadd.f32 %v810, %v762
      %v812 = vadd.f32 %v811, %v764
      %v813 = vadd.f32 %v812, %v766
      %v814 = vadd.f32 %v813, %v768
      %v815 = vadd.f32 %v814, %v770
      %v816 = vadd.f32 %v815, %v772
      %v817 = vadd.f32 %v816, %v774
      %v818 = vadd.f32 %v817, %v776
      %v819 = vadd.f32 %v818, %v778
      %v820 = vadd.f32 %v819, %v780
      %v821 = vadd.f32 %v820, %v782
      %v822 = vadd.f32 %v821, %v784
      %v823 = vadd.f32 %v822, %v786
      %v824 = vadd.f32 %v823, %v788
      %v825 = vadd.f32 %v824, %v790
      %v826 = vadd.f32 %v825, %v792
      %v827 = vadd.f32 %v826, %v794
      %v828 = vadd.f32 %v827, %v796
      %v829 = vrot.slane %v828, 4
      %v830 = vadd.f32 %v828, %v829
      %v831 = vrot.slane %v830, 2
      %v832 = vadd.f32 %v830, %v831
      %v833 = vrot.slane %v832, 1
      %v834 = vadd.f32 %v832, %v833
      %v835 = vadd.f32 %v735, %v737
      %v836 = vadd.f32 %v835, %v739
      %v837 = vadd.f32 %v836, %v741
      %v838 = vadd.f32 %v837, %v743
      %v839 = vadd.f32 %v838, %v745
      %v840 = vadd.f32 %v839, %v747
      %v841 = vadd.f32 %v840, %v749
      %v842 = vadd.f32 %v841, %v751
      %v843 = vadd.f32 %v842, %v753
      %v844 = vadd.f32 %v843, %v755
      %v845 = vadd.f32 %v844, %v757
      %v846 = vadd.f32 %v845, %v759
      %v847 = vadd.f32 %v846, %v761
      %v848 = vadd.f32 %v847, %v763
      %v849 = vadd.f32 %v848, %v765
      %v850 = vadd.f32 %v849, %v767
      %v851 = vadd.f32 %v850, %v769
      %v852 = vadd.f32 %v851, %v771
      %v853 = vadd.f32 %v852, %v773
      %v854 = vadd.f32 %v853, %v775
      %v855 = vadd.f32 %v854, %v777
      %v856 = vadd.f32 %v855, %v779
      %v857 = vadd.f32 %v856, %v781
      %v858 = vadd.f32 %v857, %v783
      %v859 = vadd.f32 %v858, %v785
      %v860 = vadd.f32 %v859, %v787
      %v861 = vadd.f32 %v860, %v789
      %v862 = vadd.f32 %v861, %v791
      %v863 = vadd.f32 %v862, %v793
      %v864 = vadd.f32 %v863, %v795
      %v865 = vadd.f32 %v864, %v797
      %v866 = vrot.slane %v865, 4
      %v867 = vadd.f32 %v865, %v866
      %v868 = vrot.slane %v867, 2
      %v869 = vadd.f32 %v867, %v868
      %v870 = vrot.slane %v869, 1
      %v871 = vadd.f32 %v869, %v870
      %v874 = vrot.slane %v871, 7
      %v875 = vsel %vm724, %v834, %v874
      %v877 = vadd.f32 %v733, %v875
      %878 = vst.msk [vmem:[%s227] sm:$0x3] %vm731, %v877
      %p879 = scmp.lt.s32.totalorder %s20, 1
      %s880 = scalar_select %p879, %s20, 1
      %s881 = smul.addr %s880, 2
      %s882 = scalar_lea.vmem %s3, %s881
      %p883 = scmp.lt.s32.totalorder %s20, 1
      %s884 = scalar_select %p883, %s20, 1
      %s885 = smul.addr %s884, 2
      %s886 = scalar_lea.vmem %s4, %s885
      // Predicated region
      $region37: #{two_layer_nn.2} parent=31 // pred_check
        %p887 = pneg %p116
      $region38: #{two_layer_nn.2} parent=31 // pred_check_branch
        %889 = sbr.rel (%p887) target = $region40
      $region39: #{two_layer_nn.2} parent=31 // pred_region
        _
      $region40: #{two_layer_nn.2} parent=31 // pred_fallthru
        _
      // Predicated region
      $region41: #{two_layer_nn.2} parent=31 // pred_check
        %p890 = pneg %p142
      $region42: #{two_layer_nn.2} parent=31 // pred_check_branch
        %892 = sbr.rel (%p890) target = $region44
      $region43: #{two_layer_nn.2} parent=31 // pred_region
        _
      $region44: #{two_layer_nn.2} parent=31 // pred_fallthru
        _
    $region32: #{two_layer_nn.2} parent=5 // pred_fallthru
      _
    %p893 = scmp.le.s32.totalorder 2, %s11
    // Predicated region
    $region45: #{two_layer_nn.2} parent=5 // pred_check
      %p894 = pneg %p893
    $region46: #{two_layer_nn.2} parent=5 // pred_check_branch
      %896 = sbr.rel (%p894) target = $region48
    $region47: #{two_layer_nn.2} parent=5 // pred_region
      %s897 = ssub.s32 %s11, 2
      // Predicated region
      $region49: #{two_layer_nn.2} parent=47 // pred_check
        %p898 = pneg %p122
      $region50: #{two_layer_nn.2} parent=47 // pred_check_branch
        %900 = sbr.rel (%p898) target = $region52
      $region51: #{two_layer_nn.2} parent=47 // pred_region
        %p901 = scmp.lt.s32.totalorder %s22, 1
        %s902 = scalar_select %p901, %s22, 1
        %s903 = smul.addr %s902, 2
        %s904 = scalar_lea.vmem %s3, %s903
      $region52: #{two_layer_nn.2} parent=47 // pred_fallthru
        _
      // Predicated region
      $region53: #{two_layer_nn.2} parent=47 // pred_check
        %p905 = pneg %p148
      $region54: #{two_layer_nn.2} parent=47 // pred_check_branch
        %907 = sbr.rel (%p905) target = $region56
      $region55: #{two_layer_nn.2} parent=47 // pred_region
        %p908 = scmp.lt.s32.totalorder %s22, 1
        %s909 = scalar_select %p908, %s22, 1
        %s910 = smul.addr %s909, 2
        %s911 = scalar_lea.vmem %s4, %s910
      $region56: #{two_layer_nn.2} parent=47 // pred_fallthru
        _
    $region48: #{two_layer_nn.2} parent=5 // pred_fallthru
      _
  $region6: #{two_layer_nn.2} parent=0 // loop_footer
    %s15 = sadd.s32 1, %s11
  $region7: #{two_layer_nn.2} parent=0 // loop_footer_branch
    %10 = sbr.rel target = $region3
  $region8: #{two_layer_nn.2} parent=0 // loop_exit
    _

// kernel: two_layer_nn.3
$region0: #{two_layer_nn.3}
  #allocation0 [shape = 'u32[]', space=smem, size = 0x4, offset = 0x4, fixed_abs, tag = 'smem constant byte address 0x4 - core index']
  #allocation1 [shape = 'u32[72,128]{1,0:T(1,128)}', space=vmem, size = 0x9000, scoped, tag = 'internal scratch']
  %s0 = inlined_call_operand.vmem [shape: bf16[512,128], index: 0, kind: input, shape index: {}]
  %s1 = inlined_call_operand.vmem [shape: bf16[128,256], index: 1, kind: input, shape index: {}]
  %s2 = inlined_call_operand.vmem [shape: f32[1,256], index: 2, kind: input, shape index: {}]
  %s3 = inlined_call_operand.vmem [shape: f32[2,1,256], index: 3, kind: input, shape index: {}]
  %s4 = inlined_call_operand.vmem [shape: f32[2,1,256], index: 4, kind: input, shape index: {}]
  %s5 = inlined_call_operand.vmem [shape: f32[1,256], index: 5, kind: input, shape index: {}]
  %s6 = inlined_call_operand.vmem [shape: f32[1,256], index: 6, kind: input, shape index: {}]
  %s7 = inlined_call_operand.vmem [shape: bf16[256,128], index: 7, kind: input, shape index: {}]
  %s8 = inlined_call_operand.vmem [shape: f32[1,128], index: 8, kind: input, shape index: {}]
  %s9 = inlined_call_operand.hbm [shape: f32[512,128], index: 9, kind: output, shape index: {}]
  %s10 = sld [smem:[#allocation0]]
  $region69: #{two_layer_nn.3} parent=0
    _
  %s12 = ssub.s32 1, %s10
  %s13 = scalar_select 0, %s12, %s10
  $region1: #{two_layer_nn.3} parent=0
    #allocation2 [shape = 'u8[262144]{0}', space=vmem, size = 0x40000, scoped, tag = 'output window, operand 0']
    #allocation3 [shape = 's32[2]{0}', space=sflag, size = 0x8, scoped, tag = 'scoped memory for two_layer_nn.3']
    %14 = vsyncpa [#allocation3], 0
    %s15 = scalar_lea.sflag [#allocation3], 1
    %16 = vsyncpa %s15, 0
    loop: start=0, step=1, limit=4
    $region2: #{two_layer_nn.3} parent=1 // loop_pre_header
      _
    $region3: #{two_layer_nn.3} parent=1 // loop_header
      %s18 = sphi 0, %s22
      %p19 = scmp.ge.s32.totalorder %s18, 4
      %s28 = sphi 0, %s30
      %s31 = sphi 0, %s28
      %s32 = sphi 0, %s31
      %s48 = sphi 0, %s32
      %s52 = sphi 0, %s52
      %s54 = sphi 0, %s52
      %s55 = sphi 0, %s54
      %s69 = sphi 0, %s55
      %s73 = sphi 0, %s73
      %s75 = sphi 0, %s73
      %s76 = sphi 0, %s75
      %s90 = sphi 0, %s76
      %s94 = sphi 0, %s94
      %s96 = sphi 0, %s94
      %s97 = sphi 0, %s96
      %s111 = sphi 0, %s97
      %s115 = sphi 0, %s115
      %s117 = sphi 0, %s115
      %s118 = sphi 0, %s117
      %s132 = sphi 0, %s118
      %s136 = sphi 0, %s136
      %s138 = sphi 0, %s136
      %s139 = sphi 0, %s138
      %s153 = sphi 0, %s139
      %s157 = sphi 0, %s157
      %s159 = sphi 0, %s157
      %s160 = sphi 0, %s159
      %s174 = sphi 0, %s160
      %s178 = sphi 0, %s178
      %s180 = sphi 0, %s178
      %s181 = sphi 0, %s180
      %s195 = sphi 0, %s181
      %s199 = sphi 0, %s199
      %s201 = sphi 0, %s199
      %s202 = sphi 0, %s201
      %s216 = sphi 0, %s202
      %s222 = sphi 0, %s224
      %s225 = sphi 0, %s222
      %s226 = sphi 0, %s225
      %s242 = sphi 0, %s226
    $region4: #{two_layer_nn.3} parent=1 // loop_header_branch
      %21 = sbr.rel (%p19) target = $region8
    $region5: #{two_layer_nn.3} parent=1 // loop_body
      %s23 = ssub.s32 %s18, 1
      %s24 = ssub.s32 %s18, 2
      %s25 = sadd.s32 %s18, 1
      %s26 = ssub.s32 %s18, %s25
      %p27 = scmp.eq.s32.totalorder %s26, 0
      %s29 = sadd.s32 %s28, 1
      %s30 = scalar_select %p27, %s28, %s29
      %p33 = pneg %p27
      %p34 = scmp.eq.s32.totalorder %s18, 1
      %p35 = por %p33, %p34
      %p36 = scmp.ne.s32.totalorder %s28, %s31
      %p37 = scmp.eq.s32.totalorder %s18, 0
      %p38 = por %p36, %p37
      %p39 = scmp.ne.s32.totalorder %s28, %s31
      %p40 = scmp.eq.s32.totalorder %s23, 1
      %p41 = por %p39, %p40
      %p42 = scmp.ne.s32.totalorder %s31, %s32
      %p43 = scmp.eq.s32.totalorder %s23, 0
      %p44 = por %p42, %p43
      %p45 = scmp.ne.s32.totalorder %s31, %s32
      %p46 = scmp.eq.s32.totalorder %s24, 1
      %p47 = por %p45, %p46
      %p49 = scmp.ne.s32.totalorder %s32, %s48
      %p50 = scmp.eq.s32.totalorder %s24, 0
      %p51 = por %p49, %p50
      %s53 = sadd.s32 %s52, 1
      %p56 = scmp.eq.s32.totalorder %s18, 1
      %p57 = scmp.ne.s32.totalorder %s52, %s54
      %p58 = scmp.eq.s32.totalorder %s18, 0
      %p59 = por %p57, %p58
      %p60 = scmp.ne.s32.totalorder %s52, %s54
      %p61 = scmp.eq.s32.totalorder %s23, 1
      %p62 = por %p60, %p61
      %p63 = scmp.ne.s32.totalorder %s54, %s55
      %p64 = scmp.eq.s32.totalorder %s23, 0
      %p65 = por %p63, %p64
      %p66 = scmp.ne.s32.totalorder %s54, %s55
      %p67 = scmp.eq.s32.totalorder %s24, 1
      %p68 = por %p66, %p67
      %p70 = scmp.ne.s32.totalorder %s55, %s69
      %p71 = scmp.eq.s32.totalorder %s24, 0
      %p72 = por %p70, %p71
      %s74 = sadd.s32 %s73, 1
      %p77 = scmp.eq.s32.totalorder %s18, 1
      %p78 = scmp.ne.s32.totalorder %s73, %s75
      %p79 = scmp.eq.s32.totalorder %s18, 0
      %p80 = por %p78, %p79
      %p81 = scmp.ne.s32.totalorder %s73, %s75
      %p82 = scmp.eq.s32.totalorder %s23, 1
      %p83 = por %p81, %p82
      %p84 = scmp.ne.s32.totalorder %s75, %s76
      %p85 = scmp.eq.s32.totalorder %s23, 0
      %p86 = por %p84, %p85
      %p87 = scmp.ne.s32.totalorder %s75, %s76
      %p88 = scmp.eq.s32.totalorder %s24, 1
      %p89 = por %p87, %p88
      %p91 = scmp.ne.s32.totalorder %s76, %s90
      %p92 = scmp.eq.s32.totalorder %s24, 0
      %p93 = por %p91, %p92
      %s95 = sadd.s32 %s94, 1
      %p98 = scmp.eq.s32.totalorder %s18, 1
      %p99 = scmp.ne.s32.totalorder %s94, %s96
      %p100 = scmp.eq.s32.totalorder %s18, 0
      %p101 = por %p99, %p100
      %p102 = scmp.ne.s32.totalorder %s94, %s96
      %p103 = scmp.eq.s32.totalorder %s23, 1
      %p104 = por %p102, %p103
      %p105 = scmp.ne.s32.totalorder %s96, %s97
      %p106 = scmp.eq.s32.totalorder %s23, 0
      %p107 = por %p105, %p106
      %p108 = scmp.ne.s32.totalorder %s96, %s97
      %p109 = scmp.eq.s32.totalorder %s24, 1
      %p110 = por %p108, %p109
      %p112 = scmp.ne.s32.totalorder %s97, %s111
      %p113 = scmp.eq.s32.totalorder %s24, 0
      %p114 = por %p112, %p113
      %s116 = sadd.s32 %s115, 1
      %p119 = scmp.eq.s32.totalorder %s18, 1
      %p120 = scmp.ne.s32.totalorder %s115, %s117
      %p121 = scmp.eq.s32.totalorder %s18, 0
      %p122 = por %p120, %p121
      %p123 = scmp.ne.s32.totalorder %s115, %s117
      %p124 = scmp.eq.s32.totalorder %s23, 1
      %p125 = por %p123, %p124
      %p126 = scmp.ne.s32.totalorder %s117, %s118
      %p127 = scmp.eq.s32.totalorder %s23, 0
      %p128 = por %p126, %p127
      %p129 = scmp.ne.s32.totalorder %s117, %s118
      %p130 = scmp.eq.s32.totalorder %s24, 1
      %p131 = por %p129, %p130
      %p133 = scmp.ne.s32.totalorder %s118, %s132
      %p134 = scmp.eq.s32.totalorder %s24, 0
      %p135 = por %p133, %p134
      %s137 = sadd.s32 %s136, 1
      %p140 = scmp.eq.s32.totalorder %s18, 1
      %p141 = scmp.ne.s32.totalorder %s136, %s138
      %p142 = scmp.eq.s32.totalorder %s18, 0
      %p143 = por %p141, %p142
      %p144 = scmp.ne.s32.totalorder %s136, %s138
      %p145 = scmp.eq.s32.totalorder %s23, 1
      %p146 = por %p144, %p145
      %p147 = scmp.ne.s32.totalorder %s138, %s139
      %p148 = scmp.eq.s32.totalorder %s23, 0
      %p149 = por %p147, %p148
      %p150 = scmp.ne.s32.totalorder %s138, %s139
      %p151 = scmp.eq.s32.totalorder %s24, 1
      %p152 = por %p150, %p151
      %p154 = scmp.ne.s32.totalorder %s139, %s153
      %p155 = scmp.eq.s32.totalorder %s24, 0
      %p156 = por %p154, %p155
      %s158 = sadd.s32 %s157, 1
      %p161 = scmp.eq.s32.totalorder %s18, 1
      %p162 = scmp.ne.s32.totalorder %s157, %s159
      %p163 = scmp.eq.s32.totalorder %s18, 0
      %p164 = por %p162, %p163
      %p165 = scmp.ne.s32.totalorder %s157, %s159
      %p166 = scmp.eq.s32.totalorder %s23, 1
      %p167 = por %p165, %p166
      %p168 = scmp.ne.s32.totalorder %s159, %s160
      %p169 = scmp.eq.s32.totalorder %s23, 0
      %p170 = por %p168, %p169
      %p171 = scmp.ne.s32.totalorder %s159, %s160
      %p172 = scmp.eq.s32.totalorder %s24, 1
      %p173 = por %p171, %p172
      %p175 = scmp.ne.s32.totalorder %s160, %s174
      %p176 = scmp.eq.s32.totalorder %s24, 0
      %p177 = por %p175, %p176
      %s179 = sadd.s32 %s178, 1
      %p182 = scmp.eq.s32.totalorder %s18, 1
      %p183 = scmp.ne.s32.totalorder %s178, %s180
      %p184 = scmp.eq.s32.totalorder %s18, 0
      %p185 = por %p183, %p184
      %p186 = scmp.ne.s32.totalorder %s178, %s180
      %p187 = scmp.eq.s32.totalorder %s23, 1
      %p188 = por %p186, %p187
      %p189 = scmp.ne.s32.totalorder %s180, %s181
      %p190 = scmp.eq.s32.totalorder %s23, 0
      %p191 = por %p189, %p190
      %p192 = scmp.ne.s32.totalorder %s180, %s181
      %p193 = scmp.eq.s32.totalorder %s24, 1
      %p194 = por %p192, %p193
      %p196 = scmp.ne.s32.totalorder %s181, %s195
      %p197 = scmp.eq.s32.totalorder %s24, 0
      %p198 = por %p196, %p197
      %s200 = sadd.s32 %s199, 1
      %p203 = scmp.eq.s32.totalorder %s18, 1
      %p204 = scmp.ne.s32.totalorder %s199, %s201
      %p205 = scmp.eq.s32.totalorder %s18, 0
      %p206 = por %p204, %p205
      %p207 = scmp.ne.s32.totalorder %s199, %s201
      %p208 = scmp.eq.s32.totalorder %s23, 1
      %p209 = por %p207, %p208
      %p210 = scmp.ne.s32.totalorder %s201, %s202
      %p211 = scmp.eq.s32.totalorder %s23, 0
      %p212 = por %p210, %p211
      %p213 = scmp.ne.s32.totalorder %s201, %s202
      %p214 = scmp.eq.s32.totalorder %s24, 1
      %p215 = por %p213, %p214
      %p217 = scmp.ne.s32.totalorder %s202, %s216
      %p218 = scmp.eq.s32.totalorder %s24, 0
      %p219 = por %p217, %p218
      %s220 = ssub.s32 %s18, %s25
      %p221 = scmp.eq.s32.totalorder %s220, 0
      %s223 = sadd.s32 %s222, 1
      %s224 = scalar_select %p221, %s222, %s223
      %p227 = pneg %p221
      %p228 = scmp.eq.s32.totalorder %s18, 1
      %p229 = por %p227, %p228
      %p230 = scmp.ne.s32.totalorder %s222, %s225
      %p231 = scmp.eq.s32.totalorder %s18, 0
      %p232 = por %p230, %p231
      %p233 = scmp.ne.s32.totalorder %s222, %s225
      %p234 = scmp.eq.s32.totalorder %s23, 1
      %p235 = por %p233, %p234
      %p236 = scmp.ne.s32.totalorder %s225, %s226
      %p237 = scmp.eq.s32.totalorder %s23, 0
      %p238 = por %p236, %p237
      %p239 = scmp.ne.s32.totalorder %s225, %s226
      %p240 = scmp.eq.s32.totalorder %s24, 1
      %p241 = por %p239, %p240
      %p243 = scmp.ne.s32.totalorder %s226, %s242
      %p244 = scmp.eq.s32.totalorder %s24, 0
      %p245 = por %p243, %p244
      %p246 = scmp.le.s32.totalorder 1, %s18
      %p247 = scmp.lt.s32.totalorder %s18, 3
      %p248 = pnand %p246, %p247
      %p249 = pneg %p248
      // Predicated region
      $region9: #{two_layer_nn.3} parent=5 // pred_check
        _
      $region10: #{two_layer_nn.3} parent=5 // pred_check_branch
        %251 = sbr.rel (%p248) target = $region12
      $region11: #{two_layer_nn.3} parent=5 // pred_region
        %s252 = ssub.s32 %s18, 1
        // Predicated region
        $region13: #{two_layer_nn.3} parent=11 // pred_check
          %p253 = pneg %p65
        $region14: #{two_layer_nn.3} parent=11 // pred_check_branch
          %255 = sbr.rel (%p253) target = $region16
        $region15: #{two_layer_nn.3} parent=11 // pred_region
          _
        $region16: #{two_layer_nn.3} parent=11 // pred_fallthru
          _
        // Predicated region
        $region17: #{two_layer_nn.3} parent=11 // pred_check
          %p256 = pneg %p86
        $region18: #{two_layer_nn.3} parent=11 // pred_check_branch
          %258 = sbr.rel (%p256) target = $region20
        $region19: #{two_layer_nn.3} parent=11 // pred_region
          _
        $region20: #{two_layer_nn.3} parent=11 // pred_fallthru
          _
        // Predicated region
        $region21: #{two_layer_nn.3} parent=11 // pred_check
          %p259 = pneg %p107
        $region22: #{two_layer_nn.3} parent=11 // pred_check_branch
          %261 = sbr.rel (%p259) target = $region24
        $region23: #{two_layer_nn.3} parent=11 // pred_region
          _
        $region24: #{two_layer_nn.3} parent=11 // pred_fallthru
          _
        // Predicated region
        $region25: #{two_layer_nn.3} parent=11 // pred_check
          %p262 = pneg %p128
        $region26: #{two_layer_nn.3} parent=11 // pred_check_branch
          %264 = sbr.rel (%p262) target = $region28
        $region27: #{two_layer_nn.3} parent=11 // pred_region
          _
        $region28: #{two_layer_nn.3} parent=11 // pred_fallthru
          _
        // Predicated region
        $region29: #{two_layer_nn.3} parent=11 // pred_check
          %p265 = pneg %p149
        $region30: #{two_layer_nn.3} parent=11 // pred_check_branch
          %267 = sbr.rel (%p265) target = $region32
        $region31: #{two_layer_nn.3} parent=11 // pred_region
          _
        $region32: #{two_layer_nn.3} parent=11 // pred_fallthru
          _
        // Predicated region
        $region33: #{two_layer_nn.3} parent=11 // pred_check
          %p268 = pneg %p170
        $region34: #{two_layer_nn.3} parent=11 // pred_check_branch
          %270 = sbr.rel (%p268) target = $region36
        $region35: #{two_layer_nn.3} parent=11 // pred_region
          _
        $region36: #{two_layer_nn.3} parent=11 // pred_fallthru
          _
        // Predicated region
        $region37: #{two_layer_nn.3} parent=11 // pred_check
          %p271 = pneg %p191
        $region38: #{two_layer_nn.3} parent=11 // pred_check_branch
          %273 = sbr.rel (%p271) target = $region40
        $region39: #{two_layer_nn.3} parent=11 // pred_region
          _
        $region40: #{two_layer_nn.3} parent=11 // pred_fallthru
          _
        // Predicated region
        $region41: #{two_layer_nn.3} parent=11 // pred_check
          %p274 = pneg %p212
        $region42: #{two_layer_nn.3} parent=11 // pred_check_branch
          %276 = sbr.rel (%p274) target = $region44
        $region43: #{two_layer_nn.3} parent=11 // pred_region
          _
        $region44: #{two_layer_nn.3} parent=11 // pred_fallthru
          _
      $region12: #{two_layer_nn.3} parent=5 // pred_fallthru
        _
      %p277 = scmp.lt.s32.totalorder %s18, 2
      // Predicated region
      $region45: #{two_layer_nn.3} parent=5 // pred_check
        %p278 = pneg %p277
      $region46: #{two_layer_nn.3} parent=5 // pred_check_branch
        %280 = sbr.rel (%p278) target = $region48
      $region47: #{two_layer_nn.3} parent=5 // pred_region
        // Predicated region
        $region49: #{two_layer_nn.3} parent=47 // pred_check
          %p281 = pneg %p38
        $region50: #{two_layer_nn.3} parent=47 // pred_check_branch
          %283 = sbr.rel (%p281) target = $region52
        $region51: #{two_layer_nn.3} parent=47 // pred_region
          %s284 = smul.u32 32, %s18
          %p285 = scmp.lt.s32.totalorder %s284, 63
          %s286 = scalar_select %p285, %s284, 63
          %s287 = smul.addr %s286, 4
          %s288 = scalar_lea.vmem %s0, %s287
          %s289 = smul.u32 32, %s18
        $region52: #{two_layer_nn.3} parent=47 // pred_fallthru
          _
      $region48: #{two_layer_nn.3} parent=5 // pred_fallthru
        _
      %p290 = scmp.le.s32.totalorder 1, %s18
      %p291 = scmp.lt.s32.totalorder %s18, 3
      %p292 = pnand %p290, %p291
      %p293 = pneg %p292
      // Predicated region
      $region53: #{two_layer_nn.3} parent=5 // pred_check
        _
      $region54: #{two_layer_nn.3} parent=5 // pred_check_branch
        %295 = sbr.rel (%p292) target = $region56
      $region55: #{two_layer_nn.3} parent=5 // pred_region
        %s296 = ssub.s32 %s18, 1
        %s297 = smul.u32 32, %s23
        %p298 = scmp.lt.s32.totalorder %s297, 63
        %s299 = scalar_select %p298, %s297, 63
        %s300 = smul.addr %s299, 4
        %s301 = scalar_lea.vmem %s0, %s300
        %p302 = pneg %p44
        %p303 = pneg %p41
        %p304 = pneg %p65
        %p305 = pneg %p62
        %p306 = pneg %p86
        %p307 = pneg %p83
        %p308 = pneg %p107
        %p309 = pneg %p104
        %p310 = pneg %p128
        %p311 = pneg %p125
        %p312 = pneg %p149
        %p313 = pneg %p146
        %p314 = pneg %p170
        %p315 = pneg %p167
        %p316 = pneg %p191
        %p317 = pneg %p188
        %p318 = pneg %p212
        %p319 = pneg %p209
        %p320 = pneg %p238
        %p321 = pneg %p235
        %s322 = sand.u32 %s225, 1
        %s323 = scalar_lea.sflag [#allocation3], %s322
        %s324 = sand.u32 %s225, 1
        %s325 = smul.addr %s324, 256
        %s326 = scalar_lea.vmem [#allocation2], %s325
        %s327 = smul.u32 32, %s23
        %p328 = scmp.lt.s32.totalorder %s327, 63
        %s329 = scalar_select %p328, %s327, 63
        %s330 = smul.addr %s329, 4
        %s331 = scalar_lea.vmem %s0, %s330
        %s332 = smul.u32 32, %s23
        %s333 = smul.u32 32, %s23
        %v334 = vld [vmem:[%s3] sm:$0x3]
        %v335 = vld [vmem:[%s3 + $0x2] sm:$0x3]
        %v338 = vperm.slane %v334, 0
        %v339 = vperm.slane %v334, 1
        %v340 = vperm.slane %v335, 0
        %v341 = vperm.slane %v335, 1
        %vm346 = vcmask 1040384
        %v347 = vsel %vm346, %v338, 0.0
        %v348 = vsel %vm346, %v340, 0.0
        %v349 = vadd.f32 %v347, %v348
        %v350 = vsel %vm346, %v339, 0.0
        %v351 = vsel %vm346, %v341, 0.0
        %v352 = vadd.f32 %v350, %v351
        %v353 = vld [vmem:[%s4] sm:$0x3]
        %v354 = vld [vmem:[%s4 + $0x2] sm:$0x3]
        %v357 = vperm.slane %v353, 0
        %v358 = vperm.slane %v353, 1
        %v359 = vperm.slane %v354, 0
        %v360 = vperm.slane %v354, 1
        %v365 = vsel %vm346, %v357, 0.0
        %v366 = vsel %vm346, %v359, 0.0
        %v367 = vadd.f32 %v365, %v366
        %v368 = vsel %vm346, %v358, 0.0
        %v369 = vsel %vm346, %v360, 0.0
        %v370 = vadd.f32 %v368, %v369
        %v371 = vmul.f32 %v349, 0.001953125
        %v372 = vmul.f32 %v352, 0.001953125
        %v373 = vmul.f32 %v367, 0.001953125
        %v374 = vmul.f32 %v370, 0.001953125
        %v375 = vmul.f32 %v371, %v371
        %v376 = vmul.f32 %v372, %v372
        %v377 = vsub.f32 %v373, %v375
        %v378 = vsub.f32 %v374, %v376
        %v379 = vmax.f32 %v377, 0.0
        %v380 = vmax.f32 %v378, 0.0
        %v381 = vld [vmem:[%s5] sm:$0x3]
        %v382 = vadd.f32 %v379, 1e-05
        %v383 = vadd.f32 %v380, 1e-05
        %v384 = vrsqrt.pop %v382
        %v385 = vmul.f32 %v384, %v382
        %v386 = vmul.f32 %v385, %v384
        %v387 = vmul.f32 0.5, %v386
        %v388 = vsub.f32 1.5, %v387
        %v389 = vmul.f32 %v384, %v388
        %vm390 = vweird.f32 %v382
        %vm391 = vweird.f32 %v384
        %vm392 = vmor %vm390, %vm391
        %v393 = vsel %vm392, %v384, %v389
        %v394 = vrsqrt.pop %v383
        %v395 = vmul.f32 %v394, %v383
        %v396 = vmul.f32 %v395, %v394
        %v397 = vmul.f32 0.5, %v396
        %v398 = vsub.f32 1.5, %v397
        %v399 = vmul.f32 %v394, %v398
        %vm400 = vweird.f32 %v383
        %vm401 = vweird.f32 %v394
        %vm402 = vmor %vm400, %vm401
        %v403 = vsel %vm402, %v394, %v399
        %v406 = vrot.slane %v403, 7
        %v407 = vsel %vm346, %v393, %v406
        %v409 = vmul.f32 %v381, %v407
        %v410 = vld [vmem:[%s6] sm:$0x3]
        %v412 = vperm.slane %v409, 0
        %v413 = vperm.slane %v409, 1
        %v416 = vmul.f32 %v371, %v412
        %v417 = vmul.f32 %v372, %v413
        %v420 = vrot.slane %v417, 7
        %v421 = vsel %vm346, %v416, %v420
        %v423 = vsub.f32 %v410, %v421
        %v424 = vld [vmem:[%s331] sm:$0xf]
        %v425 = vld [vmem:[%s331 + $0x4] sm:$0xf]
        %v426 = vld [vmem:[%s331 + $0x8] sm:$0xf]
        %v427 = vld [vmem:[%s331 + $0xc] sm:$0xf]
        %v428 = vld [vmem:[%s331 + $0x10] sm:$0xf]
        %v429 = vld [vmem:[%s331 + $0x14] sm:$0xf]
        %v430 = vld [vmem:[%s331 + $0x18] sm:$0xf]
        %v431 = vld [vmem:[%s331 + $0x1c] sm:$0xf]
        %v432 = vld [vmem:[%s331 + $0x20] sm:$0xf]
        %v433 = vld [vmem:[%s331 + $0x24] sm:$0xf]
        %v434 = vld [vmem:[%s331 + $0x28] sm:$0xf]
        %v435 = vld [vmem:[%s331 + $0x2c] sm:$0xf]
        %v436 = vld [vmem:[%s331 + $0x30] sm:$0xf]
        %v437 = vld [vmem:[%s331 + $0x34] sm:$0xf]
        %v438 = vld [vmem:[%s331 + $0x38] sm:$0xf]
        %v439 = vld [vmem:[%s331 + $0x3c] sm:$0xf]
        %v440 = vld [vmem:[%s331 + $0x40] sm:$0xf]
        %v441 = vld [vmem:[%s331 + $0x44] sm:$0xf]
        %v442 = vld [vmem:[%s331 + $0x48] sm:$0xf]
        %v443 = vld [vmem:[%s331 + $0x4c] sm:$0xf]
        %v444 = vld [vmem:[%s331 + $0x50] sm:$0xf]
        %v445 = vld [vmem:[%s331 + $0x54] sm:$0xf]
        %v446 = vld [vmem:[%s331 + $0x58] sm:$0xf]
        %v447 = vld [vmem:[%s331 + $0x5c] sm:$0xf]
        %v448 = vld [vmem:[%s331 + $0x60] sm:$0xf]
        %v449 = vld [vmem:[%s331 + $0x64] sm:$0xf]
        %v450 = vld [vmem:[%s331 + $0x68] sm:$0xf]
        %v451 = vld [vmem:[%s331 + $0x6c] sm:$0xf]
        %v452 = vld [vmem:[%s331 + $0x70] sm:$0xf]
        %v453 = vld [vmem:[%s331 + $0x74] sm:$0xf]
        %v454 = vld [vmem:[%s331 + $0x78] sm:$0xf]
        %v455 = vld [vmem:[%s331 + $0x7c] sm:$0xf]
        %v456 = vld [vmem:[%s1] sm:$0xff]
        %v457 = vld [vmem:[%s1 + $0x8] sm:$0xff]
        %v458 = vld [vmem:[%s1 + $0x10] sm:$0xff]
        %v459 = vld [vmem:[%s1 + $0x18] sm:$0xff]
        %v460 = vld [vmem:[%s1 + $0x20] sm:$0xff]
        %v461 = vld [vmem:[%s1 + $0x28] sm:$0xff]
        %v462 = vld [vmem:[%s1 + $0x30] sm:$0xff]
        %v463 = vld [vmem:[%s1 + $0x38] sm:$0xff]
        %v464 = vld [vmem:[%s1 + $0x40] sm:$0xff]
        %v465 = vld [vmem:[%s1 + $0x48] sm:$0xff]
        %v466 = vld [vmem:[%s1 + $0x50] sm:$0xff]
        %v467 = vld [vmem:[%s1 + $0x58] sm:$0xff]
        %v468 = vld [vmem:[%s1 + $0x60] sm:$0xff]
        %v469 = vld [vmem:[%s1 + $0x68] sm:$0xff]
        %v470 = vld [vmem:[%s1 + $0x70] sm:$0xff]
        %v471 = vld [vmem:[%s1 + $0x78] sm:$0xff]
        %v472 = vld [vmem:[%s2] sm:$0x3]
        %v474 = vperm.slane %v472, 0
        %v475 = vperm.slane %v472, 1
        %v510 = vunpack.c.l.b16 %v424
        %v511 = vunpack.c.l.b16 %v425
        %v512 = vunpack.c.l.b16 %v426
        %v513 = vunpack.c.l.b16 %v427
        %v514 = vunpack.c.l.b16 %v428
        %v515 = vunpack.c.l.b16 %v429
        %v516 = vunpack.c.l.b16 %v430
        %v517 = vunpack.c.l.b16 %v431
        %v518 = vunpack.c.l.b16 %v432
        %v519 = vunpack.c.l.b16 %v433
        %v520 = vunpack.c.l.b16 %v434
        %v521 = vunpack.c.l.b16 %v435
        %v522 = vunpack.c.l.b16 %v436
        %v523 = vunpack.c.l.b16 %v437
        %v524 = vunpack.c.l.b16 %v438
        %v525 = vunpack.c.l.b16 %v439
        %v526 = vunpack.c.l.b16 %v440
        %v527 = vunpack.c.l.b16 %v441
        %v528 = vunpack.c.l.b16 %v442
        %v529 = vunpack.c.l.b16 %v443
        %v530 = vunpack.c.l.b16 %v444
        %v531 = vunpack.c.l.b16 %v445
        %v532 = vunpack.c.l.b16 %v446
        %v533 = vunpack.c.l.b16 %v447
        %v534 = vunpack.c.l.b16 %v448
        %v535 = vunpack.c.l.b16 %v449
        %v536 = vunpack.c.l.b16 %v450
        %v537 = vunpack.c.l.b16 %v451
        %v538 = vunpack.c.l.b16 %v452
        %v539 = vunpack.c.l.b16 %v453
        %v540 = vunpack.c.l.b16 %v454
        %v541 = vunpack.c.l.b16 %v455
        %v542 = vpack.c.b16 %v511, %v510
        %v543 = vpack.c.b16 %v513, %v512
        %v544 = vpack.c.b16 %v515, %v514
        %v545 = vpack.c.b16 %v517, %v516
        %v546 = vpack.c.b16 %v519, %v518
        %v547 = vpack.c.b16 %v521, %v520
        %v548 = vpack.c.b16 %v523, %v522
        %v549 = vpack.c.b16 %v525, %v524
        %v550 = vpack.c.b16 %v527, %v526
        %v551 = vpack.c.b16 %v529, %v528
        %v552 = vpack.c.b16 %v531, %v530
        %v553 = vpack.c.b16 %v533, %v532
        %v554 = vpack.c.b16 %v535, %v534
        %v555 = vpack.c.b16 %v537, %v536
        %v556 = vpack.c.b16 %v539, %v538
        %v557 = vpack.c.b16 %v541, %v540
        %v590 = vunpack.c.l.b16 %v456
        %v591 = vunpack.c.h.b16 %v456
        %v592 = vunpack.c.l.b16 %v457
        %v593 = vunpack.c.h.b16 %v457
        %v594 = vunpack.c.l.b16 %v458
        %v595 = vunpack.c.h.b16 %v458
        %v596 = vunpack.c.l.b16 %v459
        %v597 = vunpack.c.h.b16 %v459
        %v598 = vunpack.c.l.b16 %v460
        %v599 = vunpack.c.h.b16 %v460
        %v600 = vunpack.c.l.b16 %v461
        %v601 = vunpack.c.h.b16 %v461
        %v602 = vunpack.c.l.b16 %v462
        %v603 = vunpack.c.h.b16 %v462
        %v604 = vunpack.c.l.b16 %v463
        %v605 = vunpack.c.h.b16 %v463
        %v606 = vunpack.c.l.b16 %v464
        %v607 = vunpack.c.h.b16 %v464
        %v608 = vunpack.c.l.b16 %v465
        %v609 = vunpack.c.h.b16 %v465
        %v610 = vunpack.c.l.b16 %v466
        %v611 = vunpack.c.h.b16 %v466
        %v612 = vunpack.c.l.b16 %v467
        %v613 = vunpack.c.h.b16 %v467
        %v614 = vunpack.c.l.b16 %v468
        %v615 = vunpack.c.h.b16 %v468
        %v616 = vunpack.c.l.b16 %v469
        %v617 = vunpack.c.h.b16 %v469
        %v618 = vunpack.c.l.b16 %v470
        %v619 = vunpack.c.h.b16 %v470
        %v620 = vunpack.c.l.b16 %v471
        %v621 = vunpack.c.h.b16 %v471
        %v622 = vpack.c.b16 %v592, %v590
        %v623 = vpack.c.b16 %v593, %v591
        %v624 = vpack.c.b16 %v596, %v594
        %v625 = vpack.c.b16 %v597, %v595
        %v626 = vpack.c.b16 %v600, %v598
        %v627 = vpack.c.b16 %v601, %v599
        %v628 = vpack.c.b16 %v604, %v602
        %v629 = vpack.c.b16 %v605, %v603
        %v630 = vpack.c.b16 %v608, %v606
        %v631 = vpack.c.b16 %v609, %v607
        %v632 = vpack.c.b16 %v612, %v610
        %v633 = vpack.c.b16 %v613, %v611
        %v634 = vpack.c.b16 %v616, %v614
        %v635 = vpack.c.b16 %v617, %v615
        %v636 = vpack.c.b16 %v620, %v618
        %v637 = vpack.c.b16 %v621, %v619
        %654 = vmatpush.bf16.msra.mxu0 %v636
        %655 = vmatpush.bf16.msra.mxu0 %v634
        %656 = vmatpush.bf16.msra.mxu0 %v632
        %657 = vmatpush.bf16.msra.mxu0 %v630
        %658 = vmatpush.bf16.msra.mxu0 %v628
        %659 = vmatpush.bf16.msra.mxu0 %v626
        %660 = vmatpush.bf16.msra.mxu0 %v624
        %661 = vmatpush.bf16.msra.mxu0 %v622
        %662 = vmatmul.bf16.gmra.mxu0 %v542
        %v663 = vpop.f32.mrf.mxu0
        %v664 = vadd.f32 %v474, %v663
        %v665 = vpop.f32.mrf.mxu0
        %v666 = vadd.f32 %v474, %v665
        %667 = vmatmul.bf16.gmra.mxu0 %v543
        %v668 = vpop.f32.mrf.mxu0
        %v669 = vadd.f32 %v474, %v668
        %v670 = vpop.f32.mrf.mxu0
        %v671 = vadd.f32 %v474, %v670
        %672 = vmatmul.bf16.gmra.mxu0 %v544
        %v673 = vpop.f32.mrf.mxu0
        %v674 = vadd.f32 %v474, %v673
        %v675 = vpop.f32.mrf.mxu0
        %v676 = vadd.f32 %v474, %v675
        %677 = vmatmul.bf16.gmra.mxu0 %v545
        %v678 = vpop.f32.mrf.mxu0
        %v679 = vadd.f32 %v474, %v678
        %v680 = vpop.f32.mrf.mxu0
        %v681 = vadd.f32 %v474, %v680
        %682 = vmatmul.bf16.gmra.mxu0 %v546
        %v683 = vpop.f32.mrf.mxu0
        %v684 = vadd.f32 %v474, %v683
        %v685 = vpop.f32.mrf.mxu0
        %v686 = vadd.f32 %v474, %v685
        %687 = vmatmul.bf16.gmra.mxu0 %v547
        %v688 = vpop.f32.mrf.mxu0
        %v689 = vadd.f32 %v474, %v688
        %v690 = vpop.f32.mrf.mxu0
        %v691 = vadd.f32 %v474, %v690
        %692 = vmatmul.bf16.gmra.mxu0 %v548
        %v693 = vpop.f32.mrf.mxu0
        %v694 = vadd.f32 %v474, %v693
        %v695 = vpop.f32.mrf.mxu0
        %v696 = vadd.f32 %v474, %v695
        %697 = vmatmul.bf16.gmra.mxu0 %v549
        %v698 = vpop.f32.mrf.mxu0
        %v699 = vadd.f32 %v474, %v698
        %v700 = vpop.f32.mrf.mxu0
        %v701 = vadd.f32 %v474, %v700
        %702 = vmatmul.bf16.gmra.mxu0 %v550
        %v703 = vpop.f32.mrf.mxu0
        %v704 = vadd.f32 %v474, %v703
        %v705 = vpop.f32.mrf.mxu0
        %v706 = vadd.f32 %v474, %v705
        %707 = vmatmul.bf16.gmra.mxu0 %v551
        %v708 = vpop.f32.mrf.mxu0
        %v709 = vadd.f32 %v474, %v708
        %v710 = vpop.f32.mrf.mxu0
        %v711 = vadd.f32 %v474, %v710
        %712 = vmatmul.bf16.gmra.mxu0 %v552
        %v713 = vpop.f32.mrf.mxu0
        %v714 = vadd.f32 %v474, %v713
        %v715 = vpop.f32.mrf.mxu0
        %v716 = vadd.f32 %v474, %v715
        %717 = vmatmul.bf16.gmra.mxu0 %v553
        %v718 = vpop.f32.mrf.mxu0
        %v719 = vadd.f32 %v474, %v718
        %v720 = vpop.f32.mrf.mxu0
        %v721 = vadd.f32 %v474, %v720
        %722 = vmatmul.bf16.gmra.mxu0 %v554
        %v723 = vpop.f32.mrf.mxu0
        %v724 = vadd.f32 %v474, %v723
        %v725 = vpop.f32.mrf.mxu0
        %v726 = vadd.f32 %v474, %v725
        %727 = vmatmul.bf16.gmra.mxu0 %v555
        %v728 = vpop.f32.mrf.mxu0
        %v729 = vadd.f32 %v474, %v728
        %v730 = vpop.f32.mrf.mxu0
        %v731 = vadd.f32 %v474, %v730
        %732 = vmatmul.bf16.gmra.mxu0 %v556
        %v733 = vpop.f32.mrf.mxu0
        %v734 = vadd.f32 %v474, %v733
        %v735 = vpop.f32.mrf.mxu0
        %v736 = vadd.f32 %v474, %v735
        %737 = vmatmul.bf16.gmra.mxu0 %v557
        %v738 = vpop.f32.mrf.mxu0
        %v739 = vadd.f32 %v474, %v738
        %v740 = vpop.f32.mrf.mxu0
        %v741 = vadd.f32 %v474, %v740
        %742 = vdwg.mxu0
        %743 = vmatpush.bf16.msra.mxu0 %v637
        %744 = vmatpush.bf16.msra.mxu0 %v635
        %745 = vmatpush.bf16.msra.mxu0 %v633
        %746 = vmatpush.bf16.msra.mxu0 %v631
        %747 = vmatpush.bf16.msra.mxu0 %v629
        %748 = vmatpush.bf16.msra.mxu0 %v627
        %749 = vmatpush.bf16.msra.mxu0 %v625
        %750 = vmatpush.bf16.msra.mxu0 %v623
        %751 = vmatmul.bf16.gmra.mxu0 %v542
        %v752 = vpop.f32.mrf.mxu0
        %v753 = vadd.f32 %v475, %v752
        %v754 = vpop.f32.mrf.mxu0
        %v755 = vadd.f32 %v475, %v754
        %756 = vmatmul.bf16.gmra.mxu0 %v543
        %v757 = vpop.f32.mrf.mxu0
        %v758 = vadd.f32 %v475, %v757
        %v759 = vpop.f32.mrf.mxu0
        %v760 = vadd.f32 %v475, %v759
        %761 = vmatmul.bf16.gmra.mxu0 %v544
        %v762 = vpop.f32.mrf.mxu0
        %v763 = vadd.f32 %v475, %v762
        %v764 = vpop.f32.mrf.mxu0
        %v765 = vadd.f32 %v475, %v764
        %766 = vmatmul.bf16.gmra.mxu0 %v545
        %v767 = vpop.f32.mrf.mxu0
        %v768 = vadd.f32 %v475, %v767
        %v769 = vpop.f32.mrf.mxu0
        %v770 = vadd.f32 %v475, %v769
        %771 = vmatmul.bf16.gmra.mxu0 %v546
        %v772 = vpop.f32.mrf.mxu0
        %v773 = vadd.f32 %v475, %v772
        %v774 = vpop.f32.mrf.mxu0
        %v775 = vadd.f32 %v475, %v774
        %776 = vmatmul.bf16.gmra.mxu0 %v547
        %v777 = vpop.f32.mrf.mxu0
        %v778 = vadd.f32 %v475, %v777
        %v779 = vpop.f32.mrf.mxu0
        %v780 = vadd.f32 %v475, %v779
        %781 = vmatmul.bf16.gmra.mxu0 %v548
        %v782 = vpop.f32.mrf.mxu0
        %v783 = vadd.f32 %v475, %v782
        %v784 = vpop.f32.mrf.mxu0
        %v785 = vadd.f32 %v475, %v784
        %786 = vmatmul.bf16.gmra.mxu0 %v549
        %v787 = vpop.f32.mrf.mxu0
        %v788 = vadd.f32 %v475, %v787
        %v789 = vpop.f32.mrf.mxu0
        %v790 = vadd.f32 %v475, %v789
        %791 = vmatmul.bf16.gmra.mxu0 %v550
        %v792 = vpop.f32.mrf.mxu0
        %v793 = vadd.f32 %v475, %v792
        %v794 = vpop.f32.mrf.mxu0
        %v795 = vadd.f32 %v475, %v794
        %796 = vmatmul.bf16.gmra.mxu0 %v551
        %v797 = vpop.f32.mrf.mxu0
        %v798 = vadd.f32 %v475, %v797
        %v799 = vpop.f32.mrf.mxu0
        %v800 = vadd.f32 %v475, %v799
        %801 = vmatmul.bf16.gmra.mxu0 %v552
        %v802 = vpop.f32.mrf.mxu0
        %v803 = vadd.f32 %v475, %v802
        %v804 = vpop.f32.mrf.mxu0
        %v805 = vadd.f32 %v475, %v804
        %806 = vmatmul.bf16.gmra.mxu0 %v553
        %v807 = vpop.f32.mrf.mxu0
        %v808 = vadd.f32 %v475, %v807
        %v809 = vpop.f32.mrf.mxu0
        %v810 = vadd.f32 %v475, %v809
        %811 = vmatmul.bf16.gmra.mxu0 %v554
        %v812 = vpop.f32.mrf.mxu0
        %v813 = vadd.f32 %v475, %v812
        %v814 = vpop.f32.mrf.mxu0
        %v815 = vadd.f32 %v475, %v814
        %816 = vmatmul.bf16.gmra.mxu0 %v555
        %v817 = vpop.f32.mrf.mxu0
        %v818 = vadd.f32 %v475, %v817
        %v819 = vpop.f32.mrf.mxu0
        %v820 = vadd.f32 %v475, %v819
        %821 = vmatmul.bf16.gmra.mxu0 %v556
        %v822 = vpop.f32.mrf.mxu0
        %v823 = vadd.f32 %v475, %v822
        %v824 = vpop.f32.mrf.mxu0
        %v825 = vadd.f32 %v475, %v824
        %826 = vmatmul.bf16.gmra.mxu0 %v557
        %v827 = vpop.f32.mrf.mxu0
        %v828 = vadd.f32 %v475, %v827
        %v829 = vpop.f32.mrf.mxu0
        %v830 = vadd.f32 %v475, %v829
        %831 = vdwg.mxu0
        %v832 = vmul.f32 %v664, %v412
        %v833 = vmul.f32 %v753, %v413
        %v834 = vmul.f32 %v666, %v412
        %v835 = vmul.f32 %v755, %v413
        %v836 = vmul.f32 %v669, %v412
        %v837 = vmul.f32 %v758, %v413
        %v838 = vmul.f32 %v671, %v412
        %v839 = vmul.f32 %v760, %v413
        %v840 = vmul.f32 %v674, %v412
        %v841 = vmul.f32 %v763, %v413
        %v842 = vmul.f32 %v676, %v412
        %v843 = vmul.f32 %v765, %v413
        %v844 = vmul.f32 %v679, %v412
        %v845 = vmul.f32 %v768, %v413
        %v846 = vmul.f32 %v681, %v412
        %v847 = vmul.f32 %v770, %v413
        %v848 = vmul.f32 %v684, %v412
        %v849 = vmul.f32 %v773, %v413
        %v850 = vmul.f32 %v686, %v412
        %v851 = vmul.f32 %v775, %v413
        %v852 = vmul.f32 %v689, %v412
        %v853 = vmul.f32 %v778, %v413
        %v854 = vmul.f32 %v691, %v412
        %v855 = vmul.f32 %v780, %v413
        %v856 = vmul.f32 %v694, %v412
        %v857 = vmul.f32 %v783, %v413
        %v858 = vmul.f32 %v696, %v412
        %v859 = vmul.f32 %v785, %v413
        %v860 = vmul.f32 %v699, %v412
        %v861 = vmul.f32 %v788, %v413
        %v862 = vmul.f32 %v701, %v412
        %v863 = vmul.f32 %v790, %v413
        %v864 = vmul.f32 %v704, %v412
        %v865 = vmul.f32 %v793, %v413
        %v866 = vmul.f32 %v706, %v412
        %v867 = vmul.f32 %v795, %v413
        %v868 = vmul.f32 %v709, %v412
        %v869 = vmul.f32 %v798, %v413
        %v870 = vmul.f32 %v711, %v412
        %v871 = vmul.f32 %v800, %v413
        %v872 = vmul.f32 %v714, %v412
        %v873 = vmul.f32 %v803, %v413
        %v874 = vmul.f32 %v716, %v412
        %v875 = vmul.f32 %v805, %v413
        %v876 = vmul.f32 %v719, %v412
        %v877 = vmul.f32 %v808, %v413
        %v878 = vmul.f32 %v721, %v412
        %v879 = vmul.f32 %v810, %v413
        %v880 = vmul.f32 %v724, %v412
        %v881 = vmul.f32 %v813, %v413
        %v882 = vmul.f32 %v726, %v412
        %v883 = vmul.f32 %v815, %v413
        %v884 = vmul.f32 %v729, %v412
        %v885 = vmul.f32 %v818, %v413
        %v886 = vmul.f32 %v731, %v412
        %v887 = vmul.f32 %v820, %v413
        %v888 = vmul.f32 %v734, %v412
        %v889 = vmul.f32 %v823, %v413
        %v890 = vmul.f32 %v736, %v412
        %v891 = vmul.f32 %v825, %v413
        %v892 = vmul.f32 %v739, %v412
        %v893 = vmul.f32 %v828, %v413
        %v894 = vmul.f32 %v741, %v412
        %v895 = vmul.f32 %v830, %v413
        %v897 = vperm.slane %v423, 0
        %v898 = vperm.slane %v423, 1
        %v901 = vadd.f32 %v832, %v897
        %v902 = vadd.f32 %v833, %v898
        %v903 = vadd.f32 %v834, %v897
        %v904 = vadd.f32 %v835, %v898
        %v905 = vadd.f32 %v836, %v897
        %v906 = vadd.f32 %v837, %v898
        %v907 = vadd.f32 %v838, %v897
        %v908 = vadd.f32 %v839, %v898
        %v909 = vadd.f32 %v840, %v897
        %v910 = vadd.f32 %v841, %v898
        %v911 = vadd.f32 %v842, %v897
        %v912 = vadd.f32 %v843, %v898
        %v913 = vadd.f32 %v844, %v897
        %v914 = vadd.f32 %v845, %v898
        %v915 = vadd.f32 %v846, %v897
        %v916 = vadd.f32 %v847, %v898
        %v917 = vadd.f32 %v848, %v897
        %v918 = vadd.f32 %v849, %v898
        %v919 = vadd.f32 %v850, %v897
        %v920 = vadd.f32 %v851, %v898
        %v921 = vadd.f32 %v852, %v897
        %v922 = vadd.f32 %v853, %v898
        %v923 = vadd.f32 %v854, %v897
        %v924 = vadd.f32 %v855, %v898
        %v925 = vadd.f32 %v856, %v897
        %v926 = vadd.f32 %v857, %v898
        %v927 = vadd.f32 %v858, %v897
        %v928 = vadd.f32 %v859, %v898
        %v929 = vadd.f32 %v860, %v897
        %v930 = vadd.f32 %v861, %v898
        %v931 = vadd.f32 %v862, %v897
        %v932 = vadd.f32 %v863, %v898
        %v933 = vadd.f32 %v864, %v897
        %v934 = vadd.f32 %v865, %v898
        %v935 = vadd.f32 %v866, %v897
        %v936 = vadd.f32 %v867, %v898
        %v937 = vadd.f32 %v868, %v897
        %v938 = vadd.f32 %v869, %v898
        %v939 = vadd.f32 %v870, %v897
        %v940 = vadd.f32 %v871, %v898
        %v941 = vadd.f32 %v872, %v897
        %v942 = vadd.f32 %v873, %v898
        %v943 = vadd.f32 %v874, %v897
        %v944 = vadd.f32 %v875, %v898
        %v945 = vadd.f32 %v876, %v897
        %v946 = vadd.f32 %v877, %v898
        %v947 = vadd.f32 %v878, %v897
        %v948 = vadd.f32 %v879, %v898
        %v949 = vadd.f32 %v880, %v897
        %v950 = vadd.f32 %v881, %v898
        %v951 = vadd.f32 %v882, %v897
        %v952 = vadd.f32 %v883, %v898
        %v953 = vadd.f32 %v884, %v897
        %v954 = vadd.f32 %v885, %v898
        %v955 = vadd.f32 %v886, %v897
        %v956 = vadd.f32 %v887, %v898
        %v957 = vadd.f32 %v888, %v897
        %v958 = vadd.f32 %v889, %v898
        %v959 = vadd.f32 %v890, %v897
        %v960 = vadd.f32 %v891, %v898
        %v961 = vadd.f32 %v892, %v897
        %v962 = vadd.f32 %v893, %v898
        %v963 = vadd.f32 %v894, %v897
        %v964 = vadd.f32 %v895, %v898
        %v965 = vmul.f32 %v901, 0.5
        %v966 = vmul.f32 %v902, 0.5
        %v967 = vmul.f32 %v903, 0.5
        %v968 = vmul.f32 %v904, 0.5
        %v969 = vmul.f32 %v905, 0.5
        %v970 = vmul.f32 %v906, 0.5
        %v971 = vmul.f32 %v907, 0.5
        %v972 = vmul.f32 %v908, 0.5
        %v973 = vmul.f32 %v909, 0.5
        %v974 = vmul.f32 %v910, 0.5
        %v975 = vmul.f32 %v911, 0.5
        %v976 = vmul.f32 %v912, 0.5
        %v977 = vmul.f32 %v913, 0.5
        %v978 = vmul.f32 %v914, 0.5
        %v979 = vmul.f32 %v915, 0.5
        %v980 = vmul.f32 %v916, 0.5
        %v981 = vmul.f32 %v917, 0.5
        %v982 = vmul.f32 %v918, 0.5
        %v983 = vmul.f32 %v919, 0.5
        %v984 = vmul.f32 %v920, 0.5
        %v985 = vmul.f32 %v921, 0.5
        %v986 = vmul.f32 %v922, 0.5
        %v987 = vmul.f32 %v923, 0.5
        %v988 = vmul.f32 %v924, 0.5
        %v989 = vmul.f32 %v925, 0.5
        %v990 = vmul.f32 %v926, 0.5
        %v991 = vmul.f32 %v927, 0.5
        %v992 = vmul.f32 %v928, 0.5
        %v993 = vmul.f32 %v929, 0.5
        %v994 = vmul.f32 %v930, 0.5
        %v995 = vmul.f32 %v931, 0.5
        %v996 = vmul.f32 %v932, 0.5
        %v997 = vmul.f32 %v933, 0.5
        %v998 = vmul.f32 %v934, 0.5
        %v999 = vmul.f32 %v935, 0.5
        %v1000 = vmul.f32 %v936, 0.5
        %v1001 = vmul.f32 %v937, 0.5
        %v1002 = vmul.f32 %v938, 0.5
        %v1003 = vmul.f32 %v939, 0.5
        %v1004 = vmul.f32 %v940, 0.5
        %v1005 = vmul.f32 %v941, 0.5
        %v1006 = vmul.f32 %v942, 0.5
        %v1007 = vmul.f32 %v943, 0.5
        %v1008 = vmul.f32 %v944, 0.5
        %v1009 = vmul.f32 %v945, 0.5
        %v1010 = vmul.f32 %v946, 0.5
        %v1011 = vmul.f32 %v947, 0.5
        %v1012 = vmul.f32 %v948, 0.5
        %v1013 = vmul.f32 %v949, 0.5
        %v1014 = vmul.f32 %v950, 0.5
        %v1015 = vmul.f32 %v951, 0.5
        %v1016 = vmul.f32 %v952, 0.5
        %v1017 = vmul.f32 %v953, 0.5
        %v1018 = vmul.f32 %v954, 0.5
        %v1019 = vmul.f32 %v955, 0.5
        %v1020 = vmul.f32 %v956, 0.5
        %v1021 = vmul.f32 %v957, 0.5
        %v1022 = vmul.f32 %v958, 0.5
        %v1023 = vmul.f32 %v959, 0.5
        %v1024 = vmul.f32 %v960, 0.5
        %v1025 = vmul.f32 %v961, 0.5
        %v1026 = vmul.f32 %v962, 0.5
        %v1027 = vmul.f32 %v963, 0.5
        %v1028 = vmul.f32 %v964, 0.5
        %v1029 = vmul.f32 %v901, 0.044715
        %v1030 = vmul.f32 %v902, 0.044715
        %v1031 = vmul.f32 %v903, 0.044715
        %v1032 = vmul.f32 %v904, 0.044715
        %v1033 = vmul.f32 %v905, 0.044715
        %v1034 = vmul.f32 %v906, 0.044715
        %v1035 = vmul.f32 %v907, 0.044715
        %v1036 = vmul.f32 %v908, 0.044715
        %v1037 = vmul.f32 %v909, 0.044715
        %v1038 = vmul.f32 %v910, 0.044715
        %v1039 = vmul.f32 %v911, 0.044715
        %v1040 = vmul.f32 %v912, 0.044715
        %v1041 = vmul.f32 %v913, 0.044715
        %v1042 = vmul.f32 %v914, 0.044715
        %v1043 = vmul.f32 %v915, 0.044715
        %v1044 = vmul.f32 %v916, 0.044715
        %v1045 = vmul.f32 %v917, 0.044715
        %v1046 = vmul.f32 %v918, 0.044715
        %v1047 = vmul.f32 %v919, 0.044715
        %v1048 = vmul.f32 %v920, 0.044715
        %v1049 = vmul.f32 %v921, 0.044715
        %v1050 = vmul.f32 %v922, 0.044715
        %v1051 = vmul.f32 %v923, 0.044715
        %v1052 = vmul.f32 %v924, 0.044715
        %v1053 = vmul.f32 %v925, 0.044715
        %v1054 = vmul.f32 %v926, 0.044715
        %v1055 = vmul.f32 %v927, 0.044715
        %v1056 = vmul.f32 %v928, 0.044715
        %v1057 = vmul.f32 %v929, 0.044715
        %v1058 = vmul.f32 %v930, 0.044715
        %v1059 = vmul.f32 %v931, 0.044715
        %v1060 = vmul.f32 %v932, 0.044715
        %v1061 = vmul.f32 %v933, 0.044715
        %v1062 = vmul.f32 %v934, 0.044715
        %v1063 = vmul.f32 %v935, 0.044715
        %v1064 = vmul.f32 %v936, 0.044715
        %v1065 = vmul.f32 %v937, 0.044715
        %v1066 = vmul.f32 %v938, 0.044715
        %v1067 = vmul.f32 %v939, 0.044715
        %v1068 = vmul.f32 %v940, 0.044715
        %v1069 = vmul.f32 %v941, 0.044715
        %v1070 = vmul.f32 %v942, 0.044715
        %v1071 = vmul.f32 %v943, 0.044715
        %v1072 = vmul.f32 %v944, 0.044715
        %v1073 = vmul.f32 %v945, 0.044715
        %v1074 = vmul.f32 %v946, 0.044715
        %v1075 = vmul.f32 %v947, 0.044715
        %v1076 = vmul.f32 %v948, 0.044715
        %v1077 = vmul.f32 %v949, 0.044715
        %v1078 = vmul.f32 %v950, 0.044715
        %v1079 = vmul.f32 %v951, 0.044715
        %v1080 = vmul.f32 %v952, 0.044715
        %v1081 = vmul.f32 %v953, 0.044715
        %v1082 = vmul.f32 %v954, 0.044715
        %v1083 = vmul.f32 %v955, 0.044715
        %v1084 = vmul.f32 %v956, 0.044715
        %v1085 = vmul.f32 %v957, 0.044715
        %v1086 = vmul.f32 %v958, 0.044715
        %v1087 = vmul.f32 %v959, 0.044715
        %v1088 = vmul.f32 %v960, 0.044715
        %v1089 = vmul.f32 %v961, 0.044715
        %v1090 = vmul.f32 %v962, 0.044715
        %v1091 = vmul.f32 %v963, 0.044715
        %v1092 = vmul.f32 %v964, 0.044715
        %v1093 = vmul.f32 %v1029, %v901
        %v1094 = vmul.f32 %v1030, %v902
        %v1095 = vmul.f32 %v1031, %v903
        %v1096 = vmul.f32 %v1032, %v904
        %v1097 = vmul.f32 %v1033, %v905
        %v1098 = vmul.f32 %v1034, %v906
        %v1099 = vmul.f32 %v1035, %v907
        %v1100 = vmul.f32 %v1036, %v908
        %v1101 = vmul.f32 %v1037, %v909
        %v1102 = vmul.f32 %v1038, %v910
        %v1103 = vmul.f32 %v1039, %v911
        %v1104 = vmul.f32 %v1040, %v912
        %v1105 = vmul.f32 %v1041, %v913
        %v1106 = vmul.f32 %v1042, %v914
        %v1107 = vmul.f32 %v1043, %v915
        %v1108 = vmul.f32 %v1044, %v916
        %v1109 = vmul.f32 %v1045, %v917
        %v1110 = vmul.f32 %v1046, %v918
        %v1111 = vmul.f32 %v1047, %v919
        %v1112 = vmul.f32 %v1048, %v920
        %v1113 = vmul.f32 %v1049, %v921
        %v1114 = vmul.f32 %v1050, %v922
        %v1115 = vmul.f32 %v1051, %v923
        %v1116 = vmul.f32 %v1052, %v924
        %v1117 = vmul.f32 %v1053, %v925
        %v1118 = vmul.f32 %v1054, %v926
        %v1119 = vmul.f32 %v1055, %v927
        %v1120 = vmul.f32 %v1056, %v928
        %v1121 = vmul.f32 %v1057, %v929
        %v1122 = vmul.f32 %v1058, %v930
        %v1123 = vmul.f32 %v1059, %v931
        %v1124 = vmul.f32 %v1060, %v932
        %v1125 = vmul.f32 %v1061, %v933
        %v1126 = vmul.f32 %v1062, %v934
        %v1127 = vmul.f32 %v1063, %v935
        %v1128 = vmul.f32 %v1064, %v936
        %v1129 = vmul.f32 %v1065, %v937
        %v1130 = vmul.f32 %v1066, %v938
        %v1131 = vmul.f32 %v1067, %v939
        %v1132 = vmul.f32 %v1068, %v940
        %v1133 = vmul.f32 %v1069, %v941
        %v1134 = vmul.f32 %v1070, %v942
        %v1135 = vmul.f32 %v1071, %v943
        %v1136 = vmul.f32 %v1072, %v944
        %v1137 = vmul.f32 %v1073, %v945
        %v1138 = vmul.f32 %v1074, %v946
        %v1139 = vmul.f32 %v1075, %v947
        %v1140 = vmul.f32 %v1076, %v948
        %v1141 = vmul.f32 %v1077, %v949
        %v1142 = vmul.f32 %v1078, %v950
        %v1143 = vmul.f32 %v1079, %v951
        %v1144 = vmul.f32 %v1080, %v952
        %v1145 = vmul.f32 %v1081, %v953
        %v1146 = vmul.f32 %v1082, %v954
        %v1147 = vmul.f32 %v1083, %v955
        %v1148 = vmul.f32 %v1084, %v956
        %v1149 = vmul.f32 %v1085, %v957
        %v1150 = vmul.f32 %v1086, %v958
        %v1151 = vmul.f32 %v1087, %v959
        %v1152 = vmul.f32 %v1088, %v960
        %v1153 = vmul.f32 %v1089, %v961
        %v1154 = vmul.f32 %v1090, %v962
        %v1155 = vmul.f32 %v1091, %v963
        %v1156 = vmul.f32 %v1092, %v964
        %v1157 = vmul.f32 %v1093, %v901
        %v1158 = vmul.f32 %v1094, %v902
        %v1159 = vmul.f32 %v1095, %v903
        %v1160 = vmul.f32 %v1096, %v904
        %v1161 = vmul.f32 %v1097, %v905
        %v1162 = vmul.f32 %v1098, %v906
        %v1163 = vmul.f32 %v1099, %v907
        %v1164 = vmul.f32 %v1100, %v908
        %v1165 = vmul.f32 %v1101, %v909
        %v1166 = vmul.f32 %v1102, %v910
        %v1167 = vmul.f32 %v1103, %v911
        %v1168 = vmul.f32 %v1104, %v912
        %v1169 = vmul.f32 %v1105, %v913
        %v1170 = vmul.f32 %v1106, %v914
        %v1171 = vmul.f32 %v1107, %v915
        %v1172 = vmul.f32 %v1108, %v916
        %v1173 = vmul.f32 %v1109, %v917
        %v1174 = vmul.f32 %v1110, %v918
        %v1175 = vmul.f32 %v1111, %v919
        %v1176 = vmul.f32 %v1112, %v920
        %v1177 = vmul.f32 %v1113, %v921
        %v1178 = vmul.f32 %v1114, %v922
        %v1179 = vmul.f32 %v1115, %v923
        %v1180 = vmul.f32 %v1116, %v924
        %v1181 = vmul.f32 %v1117, %v925
        %v1182 = vmul.f32 %v1118, %v926
        %v1183 = vmul.f32 %v1119, %v927
        %v1184 = vmul.f32 %v1120, %v928
        %v1185 = vmul.f32 %v1121, %v929
        %v1186 = vmul.f32 %v1122, %v930
        %v1187 = vmul.f32 %v1123, %v931
        %v1188 = vmul.f32 %v1124, %v932
        %v1189 = vmul.f32 %v1125, %v933
        %v1190 = vmul.f32 %v1126, %v934
        %v1191 = vmul.f32 %v1127, %v935
        %v1192 = vmul.f32 %v1128, %v936
        %v1193 = vmul.f32 %v1129, %v937
        %v1194 = vmul.f32 %v1130, %v938
        %v1195 = vmul.f32 %v1131, %v939
        %v1196 = vmul.f32 %v1132, %v940
        %v1197 = vmul.f32 %v1133, %v941
        %v1198 = vmul.f32 %v1134, %v942
        %v1199 = vmul.f32 %v1135, %v943
        %v1200 = vmul.f32 %v1136, %v944
        %v1201 = vmul.f32 %v1137, %v945
        %v1202 = vmul.f32 %v1138, %v946
        %v1203 = vmul.f32 %v1139, %v947
        %v1204 = vmul.f32 %v1140, %v948
        %v1205 = vmul.f32 %v1141, %v949
        %v1206 = vmul.f32 %v1142, %v950
        %v1207 = vmul.f32 %v1143, %v951
        %v1208 = vmul.f32 %v1144, %v952
        %v1209 = vmul.f32 %v1145, %v953
        %v1210 = vmul.f32 %v1146, %v954
        %v1211 = vmul.f32 %v1147, %v955
        %v1212 = vmul.f32 %v1148, %v956
        %v1213 = vmul.f32 %v1149, %v957
        %v1214 = vmul.f32 %v1150, %v958
        %v1215 = vmul.f32 %v1151, %v959
        %v1216 = vmul.f32 %v1152, %v960
        %v1217 = vmul.f32 %v1153, %v961
        %v1218 = vmul.f32 %v1154, %v962
        %v1219 = vmul.f32 %v1155, %v963
        %v1220 = vmul.f32 %v1156, %v964
        %v1221 = vadd.f32 %v901, %v1157
        %v1222 = vadd.f32 %v902, %v1158
        %v1223 = vadd.f32 %v903, %v1159
        %v1224 = vadd.f32 %v904, %v1160
        %v1225 = vadd.f32 %v905, %v1161
        %v1226 = vadd.f32 %v906, %v1162
        %v1227 = vadd.f32 %v907, %v1163
        %v1228 = vadd.f32 %v908, %v1164
        %v1229 = vadd.f32 %v909, %v1165
        %v1230 = vadd.f32 %v910, %v1166
        %v1231 = vadd.f32 %v911, %v1167
        %v1232 = vadd.f32 %v912, %v1168
        %v1233 = vadd.f32 %v913, %v1169
        %v1234 = vadd.f32 %v914, %v1170
        %v1235 = vadd.f32 %v915, %v1171
        %v1236 = vadd.f32 %v916, %v1172
        %v1237 = vadd.f32 %v917, %v1173
        %v1238 = vadd.f32 %v918, %v1174
        %v1239 = vadd.f32 %v919, %v1175
        %v1240 = vadd.f32 %v920, %v1176
        %v1241 = vadd.f32 %v921, %v1177
        %v1242 = vadd.f32 %v922, %v1178
        %v1243 = vadd.f32 %v923, %v1179
        %v1244 = vadd.f32 %v924, %v1180
        %v1245 = vadd.f32 %v925, %v1181
        %v1246 = vadd.f32 %v926, %v1182
        %v1247 = vadd.f32 %v927, %v1183
        %v1248 = vadd.f32 %v928, %v1184
        %v1249 = vadd.f32 %v929, %v1185
        %v1250 = vadd.f32 %v930, %v1186
        %v1251 = vadd.f32 %v931, %v1187
        %v1252 = vadd.f32 %v932, %v1188
        %v1253 = vadd.f32 %v933, %v1189
        %v1254 = vadd.f32 %v934, %v1190
        %v1255 = vadd.f32 %v935, %v1191
        %v1256 = vadd.f32 %v936, %v1192
        %v1257 = vadd.f32 %v937, %v1193
        %v1258 = vadd.f32 %v938, %v1194
        %v1259 = vadd.f32 %v939, %v1195
        %v1260 = vadd.f32 %v940, %v1196
        %v1261 = vadd.f32 %v941, %v1197
        %v1262 = vadd.f32 %v942, %v1198
        %v1263 = vadd.f32 %v943, %v1199
        %v1264 = vadd.f32 %v944, %v1200
        %v1265 = vadd.f32 %v945, %v1201
        %v1266 = vadd.f32 %v946, %v1202
        %v1267 = vadd.f32 %v947, %v1203
        %v1268 = vadd.f32 %v948, %v1204
        %v1269 = vadd.f32 %v949, %v1205
        %v1270 = vadd.f32 %v950, %v1206
        %v1271 = vadd.f32 %v951, %v1207
        %v1272 = vadd.f32 %v952, %v1208
        %v1273 = vadd.f32 %v953, %v1209
        %v1274 = vadd.f32 %v954, %v1210
        %v1275 = vadd.f32 %v955, %v1211
        %v1276 = vadd.f32 %v956, %v1212
        %v1277 = vadd.f32 %v957, %v1213
        %v1278 = vadd.f32 %v958, %v1214
        %v1279 = vadd.f32 %v959, %v1215
        %v1280 = vadd.f32 %v960, %v1216
        %v1281 = vadd.f32 %v961, %v1217
        %v1282 = vadd.f32 %v962, %v1218
        %v1283 = vadd.f32 %v963, %v1219
        %v1284 = vadd.f32 %v964, %v1220
        %v1285 = vmul.f32 %v1221, 0.7978846
        %v1286 = vmul.f32 %v1222, 0.7978846
        %v1287 = vmul.f32 %v1223, 0.7978846
        %v1288 = vmul.f32 %v1224, 0.7978846
        %v1289 = vmul.f32 %v1225, 0.7978846
        %v1290 = vmul.f32 %v1226, 0.7978846
        %v1291 = vmul.f32 %v1227, 0.7978846
        %v1292 = vmul.f32 %v1228, 0.7978846
        %v1293 = vmul.f32 %v1229, 0.7978846
        %v1294 = vmul.f32 %v1230, 0.7978846
        %v1295 = vmul.f32 %v1231, 0.7978846
        %v1296 = vmul.f32 %v1232, 0.7978846
        %v1297 = vmul.f32 %v1233, 0.7978846
        %v1298 = vmul.f32 %v1234, 0.7978846
        %v1299 = vmul.f32 %v1235, 0.7978846
        %v1300 = vmul.f32 %v1236, 0.7978846
        %v1301 = vmul.f32 %v1237, 0.7978846
        %v1302 = vmul.f32 %v1238, 0.7978846
        %v1303 = vmul.f32 %v1239, 0.7978846
        %v1304 = vmul.f32 %v1240, 0.7978846
        %v1305 = vmul.f32 %v1241, 0.7978846
        %v1306 = vmul.f32 %v1242, 0.7978846
        %v1307 = vmul.f32 %v1243, 0.7978846
        %v1308 = vmul.f32 %v1244, 0.7978846
        %v1309 = vmul.f32 %v1245, 0.7978846
        %v1310 = vmul.f32 %v1246, 0.7978846
        %v1311 = vmul.f32 %v1247, 0.7978846
        %v1312 = vmul.f32 %v1248, 0.7978846
        %v1313 = vmul.f32 %v1249, 0.7978846
        %v1314 = vmul.f32 %v1250, 0.7978846
        %v1315 = vmul.f32 %v1251, 0.7978846
        %v1316 = vmul.f32 %v1252, 0.7978846
        %v1317 = vmul.f32 %v1253, 0.7978846
        %v1318 = vmul.f32 %v1254, 0.7978846
        %v1319 = vmul.f32 %v1255, 0.7978846
        %v1320 = vmul.f32 %v1256, 0.7978846
        %v1321 = vmul.f32 %v1257, 0.7978846
        %v1322 = vmul.f32 %v1258, 0.7978846
        %v1323 = vmul.f32 %v1259, 0.7978846
        %v1324 = vmul.f32 %v1260, 0.7978846
        %v1325 = vmul.f32 %v1261, 0.7978846
        %v1326 = vmul.f32 %v1262, 0.7978846
        %v1327 = vmul.f32 %v1263, 0.7978846
        %v1328 = vmul.f32 %v1264, 0.7978846
        %v1329 = vmul.f32 %v1265, 0.7978846
        %v1330 = vmul.f32 %v1266, 0.7978846
        %v1331 = vmul.f32 %v1267, 0.7978846
        %v1332 = vmul.f32 %v1268, 0.7978846
        %v1333 = vmul.f32 %v1269, 0.7978846
        %v1334 = vmul.f32 %v1270, 0.7978846
        %v1335 = vmul.f32 %v1271, 0.7978846
        %v1336 = vmul.f32 %v1272, 0.7978846
        %v1337 = vmul.f32 %v1273, 0.7978846
        %v1338 = vmul.f32 %v1274, 0.7978846
        %v1339 = vmul.f32 %v1275, 0.7978846
        %v1340 = vmul.f32 %v1276, 0.7978846
        %v1341 = vmul.f32 %v1277, 0.7978846
        %v1342 = vmul.f32 %v1278, 0.7978846
        %v1343 = vmul.f32 %v1279, 0.7978846
        %v1344 = vmul.f32 %v1280, 0.7978846
        %v1345 = vmul.f32 %v1281, 0.7978846
        %v1346 = vmul.f32 %v1282, 0.7978846
        %v1347 = vmul.f32 %v1283, 0.7978846
        %v1348 = vmul.f32 %v1284, 0.7978846
        %v1349 = vtanh.pop %v1285
        %v1350 = vtanh.pop %v1286
        %v1351 = vtanh.pop %v1287
        %v1352 = vtanh.pop %v1288
        %v1353 = vtanh.pop %v1289
        %v1354 = vtanh.pop %v1290
        %v1355 = vtanh.pop %v1291
        %v1356 = vtanh.pop %v1292
        %v1357 = vtanh.pop %v1293
        %v1358 = vtanh.pop %v1294
        %v1359 = vtanh.pop %v1295
        %v1360 = vtanh.pop %v1296
        %v1361 = vtanh.pop %v1297
        %v1362 = vtanh.pop %v1298
        %v1363 = vtanh.pop %v1299
        %v1364 = vtanh.pop %v1300
        %v1365 = vtanh.pop %v1301
        %v1366 = vtanh.pop %v1302
        %v1367 = vtanh.pop %v1303
        %v1368 = vtanh.pop %v1304
        %v1369 = vtanh.pop %v1305
        %v1370 = vtanh.pop %v1306
        %v1371 = vtanh.pop %v1307
        %v1372 = vtanh.pop %v1308
        %v1373 = vtanh.pop %v1309
        %v1374 = vtanh.pop %v1310
        %v1375 = vtanh.pop %v1311
        %v1376 = vtanh.pop %v1312
        %v1377 = vtanh.pop %v1313
        %v1378 = vtanh.pop %v1314
        %v1379 = vtanh.pop %v1315
        %v1380 = vtanh.pop %v1316
        %v1381 = vtanh.pop %v1317
        %v1382 = vtanh.pop %v1318
        %v1383 = vtanh.pop %v1319
        %v1384 = vtanh.pop %v1320
        %v1385 = vtanh.pop %v1321
        %v1386 = vtanh.pop %v1322
        %v1387 = vtanh.pop %v1323
        %v1388 = vtanh.pop %v1324
        %v1389 = vtanh.pop %v1325
        %v1390 = vtanh.pop %v1326
        %v1391 = vtanh.pop %v1327
        %v1392 = vtanh.pop %v1328
        %v1393 = vtanh.pop %v1329
        %v1394 = vtanh.pop %v1330
        %v1395 = vtanh.pop %v1331
        %v1396 = vtanh.pop %v1332
        %v1397 = vtanh.pop %v1333
        %v1398 = vtanh.pop %v1334
        %v1399 = vtanh.pop %v1335
        %v1400 = vtanh.pop %v1336
        %v1401 = vtanh.pop %v1337
        %v1402 = vtanh.pop %v1338
        %v1403 = vtanh.pop %v1339
        %v1404 = vtanh.pop %v1340
        %v1405 = vtanh.pop %v1341
        %v1406 = vtanh.pop %v1342
        %v1407 = vtanh.pop %v1343
        %v1408 = vtanh.pop %v1344
        %v1409 = vtanh.pop %v1345
        %v1410 = vtanh.pop %v1346
        %v1411 = vtanh.pop %v1347
        %v1412 = vtanh.pop %v1348
        %v1413 = vadd.f32 %v1349, 1.0
        %v1414 = vadd.f32 %v1350, 1.0
        %v1415 = vadd.f32 %v1351, 1.0
        %v1416 = vadd.f32 %v1352, 1.0
        %v1417 = vadd.f32 %v1353, 1.0
        %v1418 = vadd.f32 %v1354, 1.0
        %v1419 = vadd.f32 %v1355, 1.0
        %v1420 = vadd.f32 %v1356, 1.0
        %v1421 = vadd.f32 %v1357, 1.0
        %v1422 = vadd.f32 %v1358, 1.0
        %v1423 = vadd.f32 %v1359, 1.0
        %v1424 = vadd.f32 %v1360, 1.0
        %v1425 = vadd.f32 %v1361, 1.0
        %v1426 = vadd.f32 %v1362, 1.0
        %v1427 = vadd.f32 %v1363, 1.0
        %v1428 = vadd.f32 %v1364, 1.0
        %v1429 = vadd.f32 %v1365, 1.0
        %v1430 = vadd.f32 %v1366, 1.0
        %v1431 = vadd.f32 %v1367, 1.0
        %v1432 = vadd.f32 %v1368, 1.0
        %v1433 = vadd.f32 %v1369, 1.0
        %v1434 = vadd.f32 %v1370, 1.0
        %v1435 = vadd.f32 %v1371, 1.0
        %v1436 = vadd.f32 %v1372, 1.0
        %v1437 = vadd.f32 %v1373, 1.0
        %v1438 = vadd.f32 %v1374, 1.0
        %v1439 = vadd.f32 %v1375, 1.0
        %v1440 = vadd.f32 %v1376, 1.0
        %v1441 = vadd.f32 %v1377, 1.0
        %v1442 = vadd.f32 %v1378, 1.0
        %v1443 = vadd.f32 %v1379, 1.0
        %v1444 = vadd.f32 %v1380, 1.0
        %v1445 = vadd.f32 %v1381, 1.0
        %v1446 = vadd.f32 %v1382, 1.0
        %v1447 = vadd.f32 %v1383, 1.0
        %v1448 = vadd.f32 %v1384, 1.0
        %v1449 = vadd.f32 %v1385, 1.0
        %v1450 = vadd.f32 %v1386, 1.0
        %v1451 = vadd.f32 %v1387, 1.0
        %v1452 = vadd.f32 %v1388, 1.0
        %v1453 = vadd.f32 %v1389, 1.0
        %v1454 = vadd.f32 %v1390, 1.0
        %v1455 = vadd.f32 %v1391, 1.0
        %v1456 = vadd.f32 %v1392, 1.0
        %v1457 = vadd.f32 %v1393, 1.0
        %v1458 = vadd.f32 %v1394, 1.0
        %v1459 = vadd.f32 %v1395, 1.0
        %v1460 = vadd.f32 %v1396, 1.0
        %v1461 = vadd.f32 %v1397, 1.0
        %v1462 = vadd.f32 %v1398, 1.0
        %v1463 = vadd.f32 %v1399, 1.0
        %v1464 = vadd.f32 %v1400, 1.0
        %v1465 = vadd.f32 %v1401, 1.0
        %v1466 = vadd.f32 %v1402, 1.0
        %v1467 = vadd.f32 %v1403, 1.0
        %v1468 = vadd.f32 %v1404, 1.0
        %v1469 = vadd.f32 %v1405, 1.0
        %v1470 = vadd.f32 %v1406, 1.0
        %v1471 = vadd.f32 %v1407, 1.0
        %v1472 = vadd.f32 %v1408, 1.0
        %v1473 = vadd.f32 %v1409, 1.0
        %v1474 = vadd.f32 %v1410, 1.0
        %v1475 = vadd.f32 %v1411, 1.0
        %v1476 = vadd.f32 %v1412, 1.0
        %v1477 = vmul.f32 %v965, %v1413
        %v1478 = vmul.f32 %v966, %v1414
        %v1479 = vmul.f32 %v967, %v1415
        %v1480 = vmul.f32 %v968, %v1416
        %v1481 = vmul.f32 %v969, %v1417
        %v1482 = vmul.f32 %v970, %v1418
        %v1483 = vmul.f32 %v971, %v1419
        %v1484 = vmul.f32 %v972, %v1420
        %v1485 = vmul.f32 %v973, %v1421
        %v1486 = vmul.f32 %v974, %v1422
        %v1487 = vmul.f32 %v975, %v1423
        %v1488 = vmul.f32 %v976, %v1424
        %v1489 = vmul.f32 %v977, %v1425
        %v1490 = vmul.f32 %v978, %v1426
        %v1491 = vmul.f32 %v979, %v1427
        %v1492 = vmul.f32 %v980, %v1428
        %v1493 = vmul.f32 %v981, %v1429
        %v1494 = vmul.f32 %v982, %v1430
        %v1495 = vmul.f32 %v983, %v1431
        %v1496 = vmul.f32 %v984, %v1432
        %v1497 = vmul.f32 %v985, %v1433
        %v1498 = vmul.f32 %v986, %v1434
        %v1499 = vmul.f32 %v987, %v1435
        %v1500 = vmul.f32 %v988, %v1436
        %v1501 = vmul.f32 %v989, %v1437
        %v1502 = vmul.f32 %v990, %v1438
        %v1503 = vmul.f32 %v991, %v1439
        %v1504 = vmul.f32 %v992, %v1440
        %v1505 = vmul.f32 %v993, %v1441
        %v1506 = vmul.f32 %v994, %v1442
        %v1507 = vmul.f32 %v995, %v1443
        %v1508 = vmul.f32 %v996, %v1444
        %v1509 = vmul.f32 %v997, %v1445
        %v1510 = vmul.f32 %v998, %v1446
        %v1511 = vmul.f32 %v999, %v1447
        %v1512 = vmul.f32 %v1000, %v1448
        %v1513 = vmul.f32 %v1001, %v1449
        %v1514 = vmul.f32 %v1002, %v1450
        %v1515 = vmul.f32 %v1003, %v1451
        %v1516 = vmul.f32 %v1004, %v1452
        %v1517 = vmul.f32 %v1005, %v1453
        %v1518 = vmul.f32 %v1006, %v1454
        %v1519 = vmul.f32 %v1007, %v1455
        %v1520 = vmul.f32 %v1008, %v1456
        %v1521 = vmul.f32 %v1009, %v1457
        %v1522 = vmul.f32 %v1010, %v1458
        %v1523 = vmul.f32 %v1011, %v1459
        %v1524 = vmul.f32 %v1012, %v1460
        %v1525 = vmul.f32 %v1013, %v1461
        %v1526 = vmul.f32 %v1014, %v1462
        %v1527 = vmul.f32 %v1015, %v1463
        %v1528 = vmul.f32 %v1016, %v1464
        %v1529 = vmul.f32 %v1017, %v1465
        %v1530 = vmul.f32 %v1018, %v1466
        %v1531 = vmul.f32 %v1019, %v1467
        %v1532 = vmul.f32 %v1020, %v1468
        %v1533 = vmul.f32 %v1021, %v1469
        %v1534 = vmul.f32 %v1022, %v1470
        %v1535 = vmul.f32 %v1023, %v1471
        %v1536 = vmul.f32 %v1024, %v1472
        %v1537 = vmul.f32 %v1025, %v1473
        %v1538 = vmul.f32 %v1026, %v1474
        %v1539 = vmul.f32 %v1027, %v1475
        %v1540 = vmul.f32 %v1028, %v1476
        %v1541 = vpack.c.bf16 %v1479, %v1477
        %v1542 = vpack.c.bf16 %v1480, %v1478
        %v1543 = vpack.c.bf16 %v1483, %v1481
        %v1544 = vpack.c.bf16 %v1484, %v1482
        %v1545 = vpack.c.bf16 %v1487, %v1485
        %v1546 = vpack.c.bf16 %v1488, %v1486
        %v1547 = vpack.c.bf16 %v1491, %v1489
        %v1548 = vpack.c.bf16 %v1492, %v1490
        %v1549 = vpack.c.bf16 %v1495, %v1493
        %v1550 = vpack.c.bf16 %v1496, %v1494
        %v1551 = vpack.c.bf16 %v1499, %v1497
        %v1552 = vpack.c.bf16 %v1500, %v1498
        %v1553 = vpack.c.bf16 %v1503, %v1501
        %v1554 = vpack.c.bf16 %v1504, %v1502
        %v1555 = vpack.c.bf16 %v1507, %v1505
        %v1556 = vpack.c.bf16 %v1508, %v1506
        %v1557 = vpack.c.bf16 %v1511, %v1509
        %v1558 = vpack.c.bf16 %v1512, %v1510
        %v1559 = vpack.c.bf16 %v1515, %v1513
        %v1560 = vpack.c.bf16 %v1516, %v1514
        %v1561 = vpack.c.bf16 %v1519, %v1517
        %v1562 = vpack.c.bf16 %v1520, %v1518
        %v1563 = vpack.c.bf16 %v1523, %v1521
        %v1564 = vpack.c.bf16 %v1524, %v1522
        %v1565 = vpack.c.bf16 %v1527, %v1525
        %v1566 = vpack.c.bf16 %v1528, %v1526
        %v1567 = vpack.c.bf16 %v1531, %v1529
        %v1568 = vpack.c.bf16 %v1532, %v1530
        %v1569 = vpack.c.bf16 %v1535, %v1533
        %v1570 = vpack.c.bf16 %v1536, %v1534
        %v1571 = vpack.c.bf16 %v1539, %v1537
        %v1572 = vpack.c.bf16 %v1540, %v1538
        %v1573 = vld [vmem:[%s7] sm:$0xf]
        %v1574 = vld [vmem:[%s7 + $0x4] sm:$0xf]
        %v1575 = vld [vmem:[%s7 + $0x8] sm:$0xf]
        %v1576 = vld [vmem:[%s7 + $0xc] sm:$0xf]
        %v1577 = vld [vmem:[%s7 + $0x10] sm:$0xf]
        %v1578 = vld [vmem:[%s7 + $0x14] sm:$0xf]
        %v1579 = vld [vmem:[%s7 + $0x18] sm:$0xf]
        %v1580 = vld [vmem:[%s7 + $0x1c] sm:$0xf]
        %v1581 = vld [vmem:[%s7 + $0x20] sm:$0xf]
        %v1582 = vld [vmem:[%s7 + $0x24] sm:$0xf]
        %v1583 = vld [vmem:[%s7 + $0x28] sm:$0xf]
        %v1584 = vld [vmem:[%s7 + $0x2c] sm:$0xf]
        %v1585 = vld [vmem:[%s7 + $0x30] sm:$0xf]
        %v1586 = vld [vmem:[%s7 + $0x34] sm:$0xf]
        %v1587 = vld [vmem:[%s7 + $0x38] sm:$0xf]
        %v1588 = vld [vmem:[%s7 + $0x3c] sm:$0xf]
        %v1589 = vld [vmem:[%s7 + $0x40] sm:$0xf]
        %v1590 = vld [vmem:[%s7 + $0x44] sm:$0xf]
        %v1591 = vld [vmem:[%s7 + $0x48] sm:$0xf]
        %v1592 = vld [vmem:[%s7 + $0x4c] sm:$0xf]
        %v1593 = vld [vmem:[%s7 + $0x50] sm:$0xf]
        %v1594 = vld [vmem:[%s7 + $0x54] sm:$0xf]
        %v1595 = vld [vmem:[%s7 + $0x58] sm:$0xf]
        %v1596 = vld [vmem:[%s7 + $0x5c] sm:$0xf]
        %v1597 = vld [vmem:[%s7 + $0x60] sm:$0xf]
        %v1598 = vld [vmem:[%s7 + $0x64] sm:$0xf]
        %v1599 = vld [vmem:[%s7 + $0x68] sm:$0xf]
        %v1600 = vld [vmem:[%s7 + $0x6c] sm:$0xf]
        %v1601 = vld [vmem:[%s7 + $0x70] sm:$0xf]
        %v1602 = vld [vmem:[%s7 + $0x74] sm:$0xf]
        %v1603 = vld [vmem:[%s7 + $0x78] sm:$0xf]
        %v1604 = vld [vmem:[%s7 + $0x7c] sm:$0xf]
        %v1605 = vld [vmem:[%s8] sm:$0x1]
        %v1607 = vperm.slane %v1605, 0
        %v1641 = vunpack.c.l.b16 %v1573
        %v1642 = vunpack.c.l.b16 %v1574
        %v1643 = vunpack.c.l.b16 %v1575
        %v1644 = vunpack.c.l.b16 %v1576
        %v1645 = vunpack.c.l.b16 %v1577
        %v1646 = vunpack.c.l.b16 %v1578
        %v1647 = vunpack.c.l.b16 %v1579
        %v1648 = vunpack.c.l.b16 %v1580
        %v1649 = vunpack.c.l.b16 %v1581
        %v1650 = vunpack.c.l.b16 %v1582
        %v1651 = vunpack.c.l.b16 %v1583
        %v1652 = vunpack.c.l.b16 %v1584
        %v1653 = vunpack.c.l.b16 %v1585
        %v1654 = vunpack.c.l.b16 %v1586
        %v1655 = vunpack.c.l.b16 %v1587
        %v1656 = vunpack.c.l.b16 %v1588
        %v1657 = vunpack.c.l.b16 %v1589
        %v1658 = vunpack.c.l.b16 %v1590
        %v1659 = vunpack.c.l.b16 %v1591
        %v1660 = vunpack.c.l.b16 %v1592
        %v1661 = vunpack.c.l.b16 %v1593
        %v1662 = vunpack.c.l.b16 %v1594
        %v1663 = vunpack.c.l.b16 %v1595
        %v1664 = vunpack.c.l.b16 %v1596
        %v1665 = vunpack.c.l.b16 %v1597
        %v1666 = vunpack.c.l.b16 %v1598
        %v1667 = vunpack.c.l.b16 %v1599
        %v1668 = vunpack.c.l.b16 %v1600
        %v1669 = vunpack.c.l.b16 %v1601
        %v1670 = vunpack.c.l.b16 %v1602
        %v1671 = vunpack.c.l.b16 %v1603
        %v1672 = vunpack.c.l.b16 %v1604
        %v1673 = vpack.c.b16 %v1642, %v1641
        %v1674 = vpack.c.b16 %v1644, %v1643
        %v1675 = vpack.c.b16 %v1646, %v1645
        %v1676 = vpack.c.b16 %v1648, %v1647
        %v1677 = vpack.c.b16 %v1650, %v1649
        %v1678 = vpack.c.b16 %v1652, %v1651
        %v1679 = vpack.c.b16 %v1654, %v1653
        %v1680 = vpack.c.b16 %v1656, %v1655
        %v1681 = vpack.c.b16 %v1658, %v1657
        %v1682 = vpack.c.b16 %v1660, %v1659
        %v1683 = vpack.c.b16 %v1662, %v1661
        %v1684 = vpack.c.b16 %v1664, %v1663
        %v1685 = vpack.c.b16 %v1666, %v1665
        %v1686 = vpack.c.b16 %v1668, %v1667
        %v1687 = vpack.c.b16 %v1670, %v1669
        %v1688 = vpack.c.b16 %v1672, %v1671
        %1705 = vmatpush.bf16.msra.mxu0 %v1680
        %1706 = vmatpush.bf16.msra.mxu0 %v1679
        %1707 = vmatpush.bf16.msra.mxu0 %v1678
        %1708 = vmatpush.bf16.msra.mxu0 %v1677
        %1709 = vmatpush.bf16.msra.mxu0 %v1676
        %1710 = vmatpush.bf16.msra.mxu0 %v1675
        %1711 = vmatpush.bf16.msra.mxu0 %v1674
        %1712 = vmatpush.bf16.msra.mxu0 %v1673
        %1713 = vmatmul.bf16.gmra.mxu0 %v1541
        %v1714 = vpop.f32.mrf.mxu0
        %v1715 = vadd.f32 %v1607, %v1714
        %v1716 = vpop.f32.mrf.mxu0
        %v1717 = vadd.f32 %v1607, %v1716
        %1718 = vmatmul.bf16.gmra.mxu0 %v1543
        %v1719 = vpop.f32.mrf.mxu0
        %v1720 = vadd.f32 %v1607, %v1719
        %v1721 = vpop.f32.mrf.mxu0
        %v1722 = vadd.f32 %v1607, %v1721
        %1723 = vmatmul.bf16.gmra.mxu0 %v1545
        %v1724 = vpop.f32.mrf.mxu0
        %v1725 = vadd.f32 %v1607, %v1724
        %v1726 = vpop.f32.mrf.mxu0
        %v1727 = vadd.f32 %v1607, %v1726
        %1728 = vmatmul.bf16.gmra.mxu0 %v1547
        %v1729 = vpop.f32.mrf.mxu0
        %v1730 = vadd.f32 %v1607, %v1729
        %v1731 = vpop.f32.mrf.mxu0
        %v1732 = vadd.f32 %v1607, %v1731
        %1733 = vmatmul.bf16.gmra.mxu0 %v1549
        %v1734 = vpop.f32.mrf.mxu0
        %v1735 = vadd.f32 %v1607, %v1734
        %v1736 = vpop.f32.mrf.mxu0
        %v1737 = vadd.f32 %v1607, %v1736
        %1738 = vmatmul.bf16.gmra.mxu0 %v1551
        %v1739 = vpop.f32.mrf.mxu0
        %v1740 = vadd.f32 %v1607, %v1739
        %v1741 = vpop.f32.mrf.mxu0
        %v1742 = vadd.f32 %v1607, %v1741
        %1743 = vmatmul.bf16.gmra.mxu0 %v1553
        %v1744 = vpop.f32.mrf.mxu0
        %v1745 = vadd.f32 %v1607, %v1744
        %v1746 = vpop.f32.mrf.mxu0
        %v1747 = vadd.f32 %v1607, %v1746
        %1748 = vmatmul.bf16.gmra.mxu0 %v1555
        %v1749 = vpop.f32.mrf.mxu0
        %v1750 = vadd.f32 %v1607, %v1749
        %v1751 = vpop.f32.mrf.mxu0
        %v1752 = vadd.f32 %v1607, %v1751
        %1753 = vmatmul.bf16.gmra.mxu0 %v1557
        %v1754 = vpop.f32.mrf.mxu0
        %v1755 = vadd.f32 %v1607, %v1754
        %v1756 = vpop.f32.mrf.mxu0
        %v1757 = vadd.f32 %v1607, %v1756
        %1758 = vmatmul.bf16.gmra.mxu0 %v1559
        %v1759 = vpop.f32.mrf.mxu0
        %v1760 = vadd.f32 %v1607, %v1759
        %v1761 = vpop.f32.mrf.mxu0
        %v1762 = vadd.f32 %v1607, %v1761
        %1763 = vmatmul.bf16.gmra.mxu0 %v1561
        %v1764 = vpop.f32.mrf.mxu0
        %v1765 = vadd.f32 %v1607, %v1764
        %v1766 = vpop.f32.mrf.mxu0
        %v1767 = vadd.f32 %v1607, %v1766
        %1768 = vmatmul.bf16.gmra.mxu0 %v1563
        %v1769 = vpop.f32.mrf.mxu0
        %v1770 = vadd.f32 %v1607, %v1769
        %v1771 = vpop.f32.mrf.mxu0
        %v1772 = vadd.f32 %v1607, %v1771
        %1773 = vmatmul.bf16.gmra.mxu0 %v1565
        %v1774 = vpop.f32.mrf.mxu0
        %v1775 = vadd.f32 %v1607, %v1774
        %v1776 = vpop.f32.mrf.mxu0
        %v1777 = vadd.f32 %v1607, %v1776
        %1778 = vmatmul.bf16.gmra.mxu0 %v1567
        %v1779 = vpop.f32.mrf.mxu0
        %v1780 = vadd.f32 %v1607, %v1779
        %v1781 = vpop.f32.mrf.mxu0
        %v1782 = vadd.f32 %v1607, %v1781
        %1783 = vmatmul.bf16.gmra.mxu0 %v1569
        %v1784 = vpop.f32.mrf.mxu0
        %v1785 = vadd.f32 %v1607, %v1784
        %v1786 = vpop.f32.mrf.mxu0
        %v1787 = vadd.f32 %v1607, %v1786
        %1788 = vmatmul.bf16.gmra.mxu0 %v1571
        %v1789 = vpop.f32.mrf.mxu0
        %v1790 = vadd.f32 %v1607, %v1789
        %v1791 = vpop.f32.mrf.mxu0
        %v1792 = vadd.f32 %v1607, %v1791
        %1793 = vdwg.mxu0
        %1794 = vmatpush.bf16.msra.mxu0 %v1688
        %1795 = vmatpush.bf16.msra.mxu0 %v1687
        %1796 = vmatpush.bf16.msra.mxu0 %v1686
        %1797 = vmatpush.bf16.msra.mxu0 %v1685
        %1798 = vmatpush.bf16.msra.mxu0 %v1684
        %1799 = vmatpush.bf16.msra.mxu0 %v1683
        %1800 = vmatpush.bf16.msra.mxu0 %v1682
        %1801 = vmatpush.bf16.msra.mxu0 %v1681
        %1802 = vmatmul.bf16.gmra.mxu0 %v1542
        %v1803 = vpop.f32.mrf.mxu0
        %v1804 = vadd.f32 %v1715, %v1803
        %v1805 = vpop.f32.mrf.mxu0
        %v1806 = vadd.f32 %v1717, %v1805
        %1807 = vmatmul.bf16.gmra.mxu0 %v1544
        %v1808 = vpop.f32.mrf.mxu0
        %v1809 = vadd.f32 %v1720, %v1808
        %v1810 = vpop.f32.mrf.mxu0
        %v1811 = vadd.f32 %v1722, %v1810
        %1812 = vmatmul.bf16.gmra.mxu0 %v1546
        %v1813 = vpop.f32.mrf.mxu0
        %v1814 = vadd.f32 %v1725, %v1813
        %v1815 = vpop.f32.mrf.mxu0
        %v1816 = vadd.f32 %v1727, %v1815
        %1817 = vmatmul.bf16.gmra.mxu0 %v1548
        %v1818 = vpop.f32.mrf.mxu0
        %v1819 = vadd.f32 %v1730, %v1818
        %v1820 = vpop.f32.mrf.mxu0
        %v1821 = vadd.f32 %v1732, %v1820
        %1822 = vmatmul.bf16.gmra.mxu0 %v1550
        %v1823 = vpop.f32.mrf.mxu0
        %v1824 = vadd.f32 %v1735, %v1823
        %v1825 = vpop.f32.mrf.mxu0
        %v1826 = vadd.f32 %v1737, %v1825
        %1827 = vmatmul.bf16.gmra.mxu0 %v1552
        %v1828 = vpop.f32.mrf.mxu0
        %v1829 = vadd.f32 %v1740, %v1828
        %v1830 = vpop.f32.mrf.mxu0
        %v1831 = vadd.f32 %v1742, %v1830
        %1832 = vmatmul.bf16.gmra.mxu0 %v1554
        %v1833 = vpop.f32.mrf.mxu0
        %v1834 = vadd.f32 %v1745, %v1833
        %v1835 = vpop.f32.mrf.mxu0
        %v1836 = vadd.f32 %v1747, %v1835
        %1837 = vmatmul.bf16.gmra.mxu0 %v1556
        %v1838 = vpop.f32.mrf.mxu0
        %v1839 = vadd.f32 %v1750, %v1838
        %v1840 = vpop.f32.mrf.mxu0
        %v1841 = vadd.f32 %v1752, %v1840
        %1842 = vmatmul.bf16.gmra.mxu0 %v1558
        %v1843 = vpop.f32.mrf.mxu0
        %v1844 = vadd.f32 %v1755, %v1843
        %v1845 = vpop.f32.mrf.mxu0
        %v1846 = vadd.f32 %v1757, %v1845
        %1847 = vmatmul.bf16.gmra.mxu0 %v1560
        %v1848 = vpop.f32.mrf.mxu0
        %v1849 = vadd.f32 %v1760, %v1848
        %v1850 = vpop.f32.mrf.mxu0
        %v1851 = vadd.f32 %v1762, %v1850
        %1852 = vmatmul.bf16.gmra.mxu0 %v1562
        %v1853 = vpop.f32.mrf.mxu0
        %v1854 = vadd.f32 %v1765, %v1853
        %v1855 = vpop.f32.mrf.mxu0
        %v1856 = vadd.f32 %v1767, %v1855
        %1857 = vmatmul.bf16.gmra.mxu0 %v1564
        %v1858 = vpop.f32.mrf.mxu0
        %v1859 = vadd.f32 %v1770, %v1858
        %v1860 = vpop.f32.mrf.mxu0
        %v1861 = vadd.f32 %v1772, %v1860
        %1862 = vmatmul.bf16.gmra.mxu0 %v1566
        %v1863 = vpop.f32.mrf.mxu0
        %v1864 = vadd.f32 %v1775, %v1863
        %v1865 = vpop.f32.mrf.mxu0
        %v1866 = vadd.f32 %v1777, %v1865
        %1867 = vmatmul.bf16.gmra.mxu0 %v1568
        %v1868 = vpop.f32.mrf.mxu0
        %v1869 = vadd.f32 %v1780, %v1868
        %v1870 = vpop.f32.mrf.mxu0
        %v1871 = vadd.f32 %v1782, %v1870
        %1872 = vmatmul.bf16.gmra.mxu0 %v1570
        %v1873 = vpop.f32.mrf.mxu0
        %v1874 = vadd.f32 %v1785, %v1873
        %v1875 = vpop.f32.mrf.mxu0
        %v1876 = vadd.f32 %v1787, %v1875
        %1877 = vmatmul.bf16.gmra.mxu0 %v1572
        %v1878 = vpop.f32.mrf.mxu0
        %v1879 = vadd.f32 %v1790, %v1878
        %v1880 = vpop.f32.mrf.mxu0
        %v1881 = vadd.f32 %v1792, %v1880
        %1882 = vdwg.mxu0
        %v1883 = vunpack.c.l.bf16 %v424
        %v1884 = vunpack.c.l.bf16 %v425
        %v1885 = vunpack.c.l.bf16 %v426
        %v1886 = vunpack.c.l.bf16 %v427
        %v1887 = vunpack.c.l.bf16 %v428
        %v1888 = vunpack.c.l.bf16 %v429
        %v1889 = vunpack.c.l.bf16 %v430
        %v1890 = vunpack.c.l.bf16 %v431
        %v1891 = vunpack.c.l.bf16 %v432
        %v1892 = vunpack.c.l.bf16 %v433
        %v1893 = vunpack.c.l.bf16 %v434
        %v1894 = vunpack.c.l.bf16 %v435
        %v1895 = vunpack.c.l.bf16 %v436
        %v1896 = vunpack.c.l.bf16 %v437
        %v1897 = vunpack.c.l.bf16 %v438
        %v1898 = vunpack.c.l.bf16 %v439
        %v1899 = vunpack.c.l.bf16 %v440
        %v1900 = vunpack.c.l.bf16 %v441
        %v1901 = vunpack.c.l.bf16 %v442
        %v1902 = vunpack.c.l.bf16 %v443
        %v1903 = vunpack.c.l.bf16 %v444
        %v1904 = vunpack.c.l.bf16 %v445
        %v1905 = vunpack.c.l.bf16 %v446
        %v1906 = vunpack.c.l.bf16 %v447
        %v1907 = vunpack.c.l.bf16 %v448
        %v1908 = vunpack.c.l.bf16 %v449
        %v1909 = vunpack.c.l.bf16 %v450
        %v1910 = vunpack.c.l.bf16 %v451
        %v1911 = vunpack.c.l.bf16 %v452
        %v1912 = vunpack.c.l.bf16 %v453
        %v1913 = vunpack.c.l.bf16 %v454
        %v1914 = vunpack.c.l.bf16 %v455
        %v1915 = vadd.f32 %v1804, %v1883
        %v1916 = vadd.f32 %v1806, %v1884
        %v1917 = vadd.f32 %v1809, %v1885
        %v1918 = vadd.f32 %v1811, %v1886
        %v1919 = vadd.f32 %v1814, %v1887
        %v1920 = vadd.f32 %v1816, %v1888
        %v1921 = vadd.f32 %v1819, %v1889
        %v1922 = vadd.f32 %v1821, %v1890
        %v1923 = vadd.f32 %v1824, %v1891
        %v1924 = vadd.f32 %v1826, %v1892
        %v1925 = vadd.f32 %v1829, %v1893
        %v1926 = vadd.f32 %v1831, %v1894
        %v1927 = vadd.f32 %v1834, %v1895
        %v1928 = vadd.f32 %v1836, %v1896
        %v1929 = vadd.f32 %v1839, %v1897
        %v1930 = vadd.f32 %v1841, %v1898
        %v1931 = vadd.f32 %v1844, %v1899
        %v1932 = vadd.f32 %v1846, %v1900
        %v1933 = vadd.f32 %v1849, %v1901
        %v1934 = vadd.f32 %v1851, %v1902
        %v1935 = vadd.f32 %v1854, %v1903
        %v1936 = vadd.f32 %v1856, %v1904
        %v1937 = vadd.f32 %v1859, %v1905
        %v1938 = vadd.f32 %v1861, %v1906
        %v1939 = vadd.f32 %v1864, %v1907
        %v1940 = vadd.f32 %v1866, %v1908
        %v1941 = vadd.f32 %v1869, %v1909
        %v1942 = vadd.f32 %v1871, %v1910
        %v1943 = vadd.f32 %v1874, %v1911
        %v1944 = vadd.f32 %v1876, %v1912
        %v1945 = vadd.f32 %v1879, %v1913
        %v1946 = vadd.f32 %v1881, %v1914
        %1947 = vst [vmem:[%s326] sm:$0xff] %v1915
        %1948 = vst [vmem:[%s326 + $0x8] sm:$0xff] %v1916
        %1949 = vst [vmem:[%s326 + $0x10] sm:$0xff] %v1917
        %1950 = vst [vmem:[%s326 + $0x18] sm:$0xff] %v1918
        %1951 = vst [vmem:[%s326 + $0x20] sm:$0xff] %v1919
        %1952 = vst [vmem:[%s326 + $0x28] sm:$0xff] %v1920
        %1953 = vst [vmem:[%s326 + $0x30] sm:$0xff] %v1921
        %1954 = vst [vmem:[%s326 + $0x38] sm:$0xff] %v1922
        %1955 = vst [vmem:[%s326 + $0x40] sm:$0xff] %v1923
        %1956 = vst [vmem:[%s326 + $0x48] sm:$0xff] %v1924
        %1957 = vst [vmem:[%s326 + $0x50] sm:$0xff] %v1925
        %1958 = vst [vmem:[%s326 + $0x58] sm:$0xff] %v1926
        %1959 = vst [vmem:[%s326 + $0x60] sm:$0xff] %v1927
        %1960 = vst [vmem:[%s326 + $0x68] sm:$0xff] %v1928
        %1961 = vst [vmem:[%s326 + $0x70] sm:$0xff] %v1929
        %1962 = vst [vmem:[%s326 + $0x78] sm:$0xff] %v1930
        %1963 = vst [vmem:[%s326 + $0x80] sm:$0xff] %v1931
        %1964 = vst [vmem:[%s326 + $0x88] sm:$0xff] %v1932
        %1965 = vst [vmem:[%s326 + $0x90] sm:$0xff] %v1933
        %1966 = vst [vmem:[%s326 + $0x98] sm:$0xff] %v1934
        %1967 = vst [vmem:[%s326 + $0xa0] sm:$0xff] %v1935
        %1968 = vst [vmem:[%s326 + $0xa8] sm:$0xff] %v1936
        %1969 = vst [vmem:[%s326 + $0xb0] sm:$0xff] %v1937
        %1970 = vst [vmem:[%s326 + $0xb8] sm:$0xff] %v1938
        %1971 = vst [vmem:[%s326 + $0xc0] sm:$0xff] %v1939
        %1972 = vst [vmem:[%s326 + $0xc8] sm:$0xff] %v1940
        %1973 = vst [vmem:[%s326 + $0xd0] sm:$0xff] %v1941
        %1974 = vst [vmem:[%s326 + $0xd8] sm:$0xff] %v1942
        %1975 = vst [vmem:[%s326 + $0xe0] sm:$0xff] %v1943
        %1976 = vst [vmem:[%s326 + $0xe8] sm:$0xff] %v1944
        %1977 = vst [vmem:[%s326 + $0xf0] sm:$0xff] %v1945
        %1978 = vst [vmem:[%s326 + $0xf8] sm:$0xff] %v1946
        %s1979 = sand.u32 %s225, 1
        %s1980 = scalar_lea.sflag [#allocation3], %s1979
        %s1981 = sand.u32 %s225, 1
        %s1982 = smul.addr %s1981, 256
        %s1983 = scalar_lea.vmem [#allocation2], %s1982
        // Predicated region
        $region57: #{two_layer_nn.3} parent=55 // pred_check
          %p1984 = pneg %p235
        $region58: #{two_layer_nn.3} parent=55 // pred_check_branch
          %1986 = sbr.rel (%p1984) target = $region60
        $region59: #{two_layer_nn.3} parent=55 // pred_region
          %s1987 = smul.u32 32, %s23
          %1989 = vsyncadd %s1980, 0
          %s1990 = smul.addr %s1987, 8
          %s1991 = scalar_lea.hbm %s9, %s1990
          %s1992 = sshll.u32 %s1983, 4
          %s1993 = int_to_ptr.vmem [resolvable:$true] %s1992
          %s1994 = sshll.u32 %s1991, 4
          %s1995 = int_to_ptr.hbm [resolvable:$true] %s1994
          %2000 = dma.vmem_to_hbm [thread:$0]  %s1993, 4096, %s1995, %s1980, 128, 128, 8
        $region60: #{two_layer_nn.3} parent=55 // pred_fallthru
          _
      $region56: #{two_layer_nn.3} parent=5 // pred_fallthru
        _
      %p2001 = scmp.le.s32.totalorder 2, %s18
      // Predicated region
      $region61: #{two_layer_nn.3} parent=5 // pred_check
        %p2002 = pneg %p2001
      $region62: #{two_layer_nn.3} parent=5 // pred_check_branch
        %2004 = sbr.rel (%p2002) target = $region64
      $region63: #{two_layer_nn.3} parent=5 // pred_region
        %s2005 = ssub.s32 %s18, 2
        // Predicated region
        $region65: #{two_layer_nn.3} parent=63 // pred_check
          %p2006 = pneg %p241
        $region66: #{two_layer_nn.3} parent=63 // pred_check_branch
          %2008 = sbr.rel (%p2006) target = $region68
        $region67: #{two_layer_nn.3} parent=63 // pred_region
          %s2009 = sand.u32 %s226, 1
          %s2010 = scalar_lea.sflag [#allocation3], %s2009
          %s2011 = sand.u32 %s226, 1
          %s2012 = smul.addr %s2011, 256
          %s2013 = scalar_lea.vmem [#allocation2], %s2012
          %2015 = dma.done %s2010, 4096
        $region68: #{two_layer_nn.3} parent=63 // pred_fallthru
          _
      $region64: #{two_layer_nn.3} parent=5 // pred_fallthru
        _
    $region6: #{two_layer_nn.3} parent=1 // loop_footer
      %s22 = sadd.s32 1, %s18
    $region7: #{two_layer_nn.3} parent=1 // loop_footer_branch
      %17 = sbr.rel target = $region3
    $region8: #{two_layer_nn.3} parent=1 // loop_exit
      _
    %2016 = vsyncpa [#allocation3], 1
    %s2017 = scalar_lea.sflag [#allocation3], 1
    %2018 = vsyncpa %s2017, 1

</llo_original>
